<compile_context>
chip_gen: v5e
topology: v5e:2x2
jax: 0.10.0
libtpu: 0.0.40
codegen_flags: <defaults>
</compile_context>

<pallas_src>
import functools

import jax
import jax.numpy as jnp
from jax import lax
from jax.experimental import pallas as pl
from jax.experimental.pallas import tpu as pltpu

LANE = 128  # TPU lane width; hidden size is padded up to a multiple of this.


def _gru_recurrence_kernel(gx_ref, h0_ref, whh_ref, bhhn_ref, out_ref, *, seq_len, hp):
    """Single-invocation GRU recurrence (whole sequence, no time grid).

    gx_ref  : (S, B, 3*Hp) f32  precomputed x@W_ih^T + b_ih (+ b_hh for r,z),
                                gate blocks lane-aligned at offsets 0, Hp, 2*Hp.
    h0_ref  : (B, Hp)      f32  initial hidden (zero-padded lanes).
    whh_ref : (Hp, 3*Hp)   f32  W_hh^T with lane-aligned gate blocks (padded rows are zero).
    bhhn_ref: (1, Hp)      f32  recurrent bias of the n gate (kept separate: scaled by r).
    out_ref : (S, B, Hp)   f32  h_t for every timestep (time-major, 128-lane dense).
    """
    B = h0_ref.shape[0]
    whh = whh_ref[...]                                     # resident weights, read once
    bhh_n = jnp.broadcast_to(bhhn_ref[...], (B, hp))       # hoisted broadcast (no per-iter bcast)

    def step(t, h):
        gx = gx_ref[t]                                     # (B, 3*Hp)
        gh = jnp.dot(h, whh, preferred_element_type=jnp.float32)   # (B, 3*Hp) on MXU
        # torch.nn.GRU gate order (r, z, n); all slices are 128-lane aligned.
        r = jax.nn.sigmoid(gx[:, 0 * hp:1 * hp] + gh[:, 0 * hp:1 * hp])
        z = jax.nn.sigmoid(gx[:, 1 * hp:2 * hp] + gh[:, 1 * hp:2 * hp])
        n = jnp.tanh(gx[:, 2 * hp:3 * hp] + r * (gh[:, 2 * hp:3 * hp] + bhh_n))
        h_new = (1.0 - z) * n + z * h
        out_ref[t] = h_new                                 # full (B, Hp) lane-dense store
        return h_new

    lax.fori_loop(0, seq_len, step, h0_ref[...], unroll=True)


@jax.jit
def _encoder_core(tokens, h0, embedding, w_ih_t, b_x, whh_t_pad, bhh_n_pad):
    """tokens: (B, S) int32, h0: (B, H). Returns (output (B, S, H), h_last (B, H))."""
    B, S = tokens.shape
    H = embedding.shape[1]
    Hp = whh_t_pad.shape[0]
    pad_h = Hp - H

    # Time-major embedding gather: avoids a (B,S,H)->(S,B,H) activation transpose.
    emb_sbh = embedding[tokens.T]                                   # (S, B, H)

    # Hoisted input projection over all timesteps: one large MXU matmul, off the
    # sequential critical path. b_ih (+ b_hh for r,z) already folded into b_x.
    gx = jnp.einsum('sbh,hg->sbg', emb_sbh, w_ih_t) + b_x           # (S, B, 3H)

    # Lane-align each gate block at offsets {0, Hp, 2Hp}, zero-padding to 128 lanes.
    def pad_gate(x):
        return jnp.pad(x, ((0, 0), (0, 0), (0, pad_h)))
    gx = jnp.concatenate([pad_gate(gx[..., 0 * H:1 * H]),
                          pad_gate(gx[..., 1 * H:2 * H]),
                          pad_gate(gx[..., 2 * H:3 * H])], axis=-1)  # (S, B, 3*Hp)

    h0p = jnp.pad(h0.astype(jnp.float32), ((0, 0), (0, pad_h)))      # (B, Hp)

    kernel = functools.partial(_gru_recurrence_kernel, seq_len=S, hp=Hp)
    out = pl.pallas_call(
        kernel,
        out_shape=jax.ShapeDtypeStruct((S, B, Hp), jnp.float32),
        in_specs=[pl.BlockSpec(memory_space=pltpu.MemorySpace.VMEM)] * 4,
        out_specs=pl.BlockSpec(memory_space=pltpu.MemorySpace.VMEM),
    )(gx, h0p, whh_t_pad, bhh_n_pad)

    out_h = out[..., :H]                        # strip lane padding
    output = jnp.transpose(out_h, (1, 0, 2))    # batch-first (B, S, H), as torch's GRU
    h_last = out_h[S - 1]                       # (B, H) — final hidden (no per-step hN writes)
    return output, h_last


class EncoderRNNPallas:
    """JAX/Pallas port of EncoderRNN.forward (Embedding -> GRU, batch_first)."""

    def __init__(self, input_size, hidden_size, cond_size, key):
        assert hidden_size > 8
        self.input_size = input_size
        self.hidden_size = hidden_size
        self.cond_size = cond_size

        H = hidden_size
        Hp = pl.cdiv(H, LANE) * LANE
        self.hp = Hp
        bound = 1.0 / (H ** 0.5)
        k = jax.random.split(key, 6)

        # Embedding tables (torch default: N(0,1)).
        self.embedding = jax.random.normal(k[0], (input_size, H), jnp.float32)
        self.cond_embedding = jax.random.normal(k[1], (cond_size, 8), jnp.float32)

        # GRU params in torch layout, gate order (r, z, n).
        self.w_ih = jax.random.uniform(k[2], (3 * H, H), jnp.float32, -bound, bound)
        self.w_hh = jax.random.uniform(k[3], (3 * H, H), jnp.float32, -bound, bound)
        self.b_ih = jax.random.uniform(k[4], (3 * H,), jnp.float32, -bound, bound)
        self.b_hh = jax.random.uniform(k[5], (3 * H,), jnp.float32, -bound, bound)

        # --- precomputed kernel-side layouts (done once at init) -----------------
        # Input-projection weights (H, 3H); b_hh for r,z folded into the input bias
        # (the n-gate recurrent bias must stay separate: it is scaled by r).
        self.w_ih_t = self.w_ih.T
        self.b_x = self.b_ih + jnp.concatenate(
            [self.b_hh[:2 * H], jnp.zeros((H,), jnp.float32)])
        # Recurrent weights, transposed + zero-padded, gate blocks lane-aligned.
        whh_t = jnp.zeros((Hp, 3 * Hp), jnp.float32)
        for g in range(3):
            whh_t = whh_t.at[:H, g * Hp:g * Hp + H].set(
                self.w_hh[g * H:(g + 1) * H, :].T)
        self.whh_t_pad = whh_t
        self.bhh_n_pad = jnp.pad(self.b_hh[2 * H:], (0, Hp - H)).reshape(1, Hp)
        # TODO(synk): for production H, cast whh_t_pad / gx to bf16 (f32 accumulate) and
        # add a "parallel" batch grid axis to use the second TensorCore on v7x.

    def init_hidden(self, cond_tensor):
        B = cond_tensor.shape[0]
        h0_pad = jnp.zeros((B, self.hidden_size - 8), jnp.float32)
        cond_emb = self.cond_embedding[cond_tensor].reshape(B, 8)
        hidden = jnp.concatenate([h0_pad, cond_emb], axis=1)       # (B, H)
        return hidden.reshape(1, B, self.hidden_size)               # (1, B, H)

    def __call__(self, tokens, cond, hidden=None):
        # tokens: (B, S) int32, cond: (B,) int32
        if hidden is None:
            hidden = self.init_hidden(cond)                         # (1, B, H)
        B = tokens.shape[0]
        output, h_last = _encoder_core(tokens, hidden[0], self.embedding,
                                       self.w_ih_t, self.b_x,
                                       self.whh_t_pad, self.bhh_n_pad)
        return output, h_last.reshape(1, B, self.hidden_size)


def _gru_reference(emb_bsh, h0, w_ih, w_hh, b_ih, b_hh):
    """Pure-JAX reference (lax.scan) with torch.nn.GRU semantics, unpadded params."""
    H = h0.shape[-1]

    def step(h, x_t):
        gx = x_t @ w_ih.T + b_ih
        gh = h @ w_hh.T + b_hh
        r = jax.nn.sigmoid(gx[:, :H] + gh[:, :H])
        z = jax.nn.sigmoid(gx[:, H:2 * H] + gh[:, H:2 * H])
        n = jnp.tanh(gx[:, 2 * H:] + r * gh[:, 2 * H:])
        h_new = (1.0 - z) * n + z * h
        return h_new, h_new

    h_last, outs = lax.scan(step, h0, jnp.transpose(emb_bsh, (1, 0, 2)))
    return jnp.transpose(outs, (1, 0, 2)), h_last


if __name__ == "__main__":
    INPUT_SIZE, HIDDEN_SIZE, COND_SIZE = 20, 32, 4
    BATCH, SEQ = 8, 8

    key = jax.random.PRNGKey(0)
    k_tok, k_cond, k_params = jax.random.split(key, 3)

    tokens = jax.random.randint(k_tok, (BATCH, SEQ), 0, INPUT_SIZE, jnp.int32)
    cond = jax.random.randint(k_cond, (BATCH,), 0, COND_SIZE, jnp.int32)

    enc = EncoderRNNPallas(INPUT_SIZE, HIDDEN_SIZE, COND_SIZE, k_params)

    output, hidden = enc(tokens, cond)
    output = jax.block_until_ready(output)
    hidden = jax.block_until_ready(hidden)

    # Check against pure-JAX reference (torch GRU semantics).
    embedded = enc.embedding[tokens]                 # (B, S, H)
    h0 = enc.init_hidden(cond)[0]
    out_ref, h_ref = _gru_reference(embedded, h0, enc.w_ih, enc.w_hh, enc.b_ih, enc.b_hh)

    assert output.shape == (BATCH, SEQ, HIDDEN_SIZE)
    assert hidden.shape == (1, BATCH, HIDDEN_SIZE)
    assert jnp.allclose(output, out_ref, atol=1e-4, rtol=1e-4)
    assert jnp.allclose(hidden[0], h_ref, atol=1e-4, rtol=1e-4)

    print("KERNEL_OK")
</pallas_src>

<mosaic_0001>
module attributes {stable_mosaic.version = 11 : i64} {
  func.func @_gru_recurrence_kernel(%arg0: memref<8x8x384xf32, #tpu.memory_space<vmem>>, %arg1: memref<8x128xf32, #tpu.memory_space<vmem>>, %arg2: memref<128x384xf32, #tpu.memory_space<vmem>>, %arg3: memref<1x128xf32, #tpu.memory_space<vmem>>, %arg4: memref<8x8x128xf32, #tpu.memory_space<vmem>>) attributes {dimension_semantics = [], scalar_prefetch = 0 : i64, scratch_operands = 0 : i64, tpu.core_type = #tpu.core_type<tc>} {
    %c0 = arith.constant 0 : index
    %c0_0 = arith.constant 0 : index
    %0 = vector.load %arg2[%c0, %c0_0] : memref<128x384xf32, #tpu.memory_space<vmem>>, vector<128x384xf32>
    %c0_1 = arith.constant 0 : index
    %c0_2 = arith.constant 0 : index
    %1 = vector.load %arg3[%c0_1, %c0_2] : memref<1x128xf32, #tpu.memory_space<vmem>>, vector<1x128xf32>
    %2 = vector.shape_cast %1 : vector<1x128xf32> to vector<1x128xf32>
    %3 = vector.broadcast %2 : vector<1x128xf32> to vector<8x128xf32>
    %c0_3 = arith.constant 0 : index
    %c0_4 = arith.constant 0 : index
    %4 = vector.load %arg1[%c0_3, %c0_4] : memref<8x128xf32, #tpu.memory_space<vmem>>, vector<8x128xf32>
    %c0_i32 = arith.constant 0 : i32
    %5 = arith.index_cast %c0_i32 : i32 to index
    %c0_5 = arith.constant 0 : index
    %c0_6 = arith.constant 0 : index
    %6 = vector.load %arg0[%5, %c0_5, %c0_6] : memref<8x8x384xf32, #tpu.memory_space<vmem>>, vector<1x8x384xf32>
    %7 = vector.shape_cast %6 : vector<1x8x384xf32> to vector<8x384xf32>
    %cst = arith.constant dense<0.000000e+00> : vector<8x384xf32>
    %8 = tpu.matmul %4, %0, %cst {dimension_numbers = #tpu.dot_dimension_numbers<[1], [0], [0], [1], [0, 0, 1, 1], [], []>} : vector<8x128xf32>, vector<128x384xf32>, vector<8x384xf32> -> vector<8x384xf32>
    %9 = vector.extract_strided_slice %7 {offsets = [0, 0], sizes = [8, 128], strides = [1, 1]} : vector<8x384xf32> to vector<8x128xf32>
    %10 = vector.extract_strided_slice %8 {offsets = [0, 0], sizes = [8, 128], strides = [1, 1]} : vector<8x384xf32> to vector<8x128xf32>
    %11 = arith.addf %9, %10 : vector<8x128xf32>
    %12 = arith.negf %11 : vector<8x128xf32>
    %13 = math.exp %12 : vector<8x128xf32>
    %cst_7 = arith.constant 1.000000e+00 : f32
    %14 = vector.broadcast %cst_7 : f32 to vector<8x128xf32>
    %15 = arith.addf %14, %13 : vector<8x128xf32>
    %16 = arith.divf %14, %15 : vector<8x128xf32>
    %17 = vector.extract_strided_slice %7 {offsets = [0, 128], sizes = [8, 128], strides = [1, 1]} : vector<8x384xf32> to vector<8x128xf32>
    %18 = vector.extract_strided_slice %8 {offsets = [0, 128], sizes = [8, 128], strides = [1, 1]} : vector<8x384xf32> to vector<8x128xf32>
    %19 = arith.addf %17, %18 : vector<8x128xf32>
    %20 = arith.negf %19 : vector<8x128xf32>
    %21 = math.exp %20 : vector<8x128xf32>
    %cst_8 = arith.constant 1.000000e+00 : f32
    %22 = vector.broadcast %cst_8 : f32 to vector<8x128xf32>
    %23 = arith.addf %22, %21 : vector<8x128xf32>
    %24 = arith.divf %22, %23 : vector<8x128xf32>
    %25 = vector.extract_strided_slice %7 {offsets = [0, 256], sizes = [8, 128], strides = [1, 1]} : vector<8x384xf32> to vector<8x128xf32>
    %26 = vector.extract_strided_slice %8 {offsets = [0, 256], sizes = [8, 128], strides = [1, 1]} : vector<8x384xf32> to vector<8x128xf32>
    %27 = arith.addf %26, %3 : vector<8x128xf32>
    %28 = arith.mulf %16, %27 : vector<8x128xf32>
    %29 = arith.addf %25, %28 : vector<8x128xf32>
    %30 = math.tanh %29 : vector<8x128xf32>
    %cst_9 = arith.constant 1.000000e+00 : f32
    %31 = vector.broadcast %cst_9 : f32 to vector<8x128xf32>
    %32 = arith.subf %31, %24 : vector<8x128xf32>
    %33 = arith.mulf %32, %30 : vector<8x128xf32>
    %34 = arith.mulf %24, %4 : vector<8x128xf32>
    %35 = arith.addf %33, %34 : vector<8x128xf32>
    %36 = arith.index_cast %c0_i32 : i32 to index
    %c0_10 = arith.constant 0 : index
    %c0_11 = arith.constant 0 : index
    %37 = vector.load %arg4[%36, %c0_10, %c0_11] : memref<8x8x128xf32, #tpu.memory_space<vmem>>, vector<1x8x128xf32>
    %38 = vector.shape_cast %37 : vector<1x8x128xf32> to vector<8x128xf32>
    %39 = vector.shape_cast %35 : vector<8x128xf32> to vector<1x8x128xf32>
    tpu.vector_store %arg4[%36, %c0_10, %c0_11], %39 {strides = array<i32>} : memref<8x8x128xf32, #tpu.memory_space<vmem>>, vector<1x8x128xf32>,
    %c1_i32 = arith.constant 1 : i32
    %40 = arith.index_cast %c1_i32 : i32 to index
    %c0_12 = arith.constant 0 : index
    %c0_13 = arith.constant 0 : index
    %41 = vector.load %arg0[%40, %c0_12, %c0_13] : memref<8x8x384xf32, #tpu.memory_space<vmem>>, vector<1x8x384xf32>
    %42 = vector.shape_cast %41 : vector<1x8x384xf32> to vector<8x384xf32>
    %cst_14 = arith.constant dense<0.000000e+00> : vector<8x384xf32>
    %43 = tpu.matmul %35, %0, %cst_14 {dimension_numbers = #tpu.dot_dimension_numbers<[1], [0], [0], [1], [0, 0, 1, 1], [], []>} : vector<8x128xf32>, vector<128x384xf32>, vector<8x384xf32> -> vector<8x384xf32>
    %44 = vector.extract_strided_slice %42 {offsets = [0, 0], sizes = [8, 128], strides = [1, 1]} : vector<8x384xf32> to vector<8x128xf32>
    %45 = vector.extract_strided_slice %43 {offsets = [0, 0], sizes = [8, 128], strides = [1, 1]} : vector<8x384xf32> to vector<8x128xf32>
    %46 = arith.addf %44, %45 : vector<8x128xf32>
    %47 = arith.negf %46 : vector<8x128xf32>
    %48 = math.exp %47 : vector<8x128xf32>
    %cst_15 = arith.constant 1.000000e+00 : f32
    %49 = vector.broadcast %cst_15 : f32 to vector<8x128xf32>
    %50 = arith.addf %49, %48 : vector<8x128xf32>
    %51 = arith.divf %49, %50 : vector<8x128xf32>
    %52 = vector.extract_strided_slice %42 {offsets = [0, 128], sizes = [8, 128], strides = [1, 1]} : vector<8x384xf32> to vector<8x128xf32>
    %53 = vector.extract_strided_slice %43 {offsets = [0, 128], sizes = [8, 128], strides = [1, 1]} : vector<8x384xf32> to vector<8x128xf32>
    %54 = arith.addf %52, %53 : vector<8x128xf32>
    %55 = arith.negf %54 : vector<8x128xf32>
    %56 = math.exp %55 : vector<8x128xf32>
    %cst_16 = arith.constant 1.000000e+00 : f32
    %57 = vector.broadcast %cst_16 : f32 to vector<8x128xf32>
    %58 = arith.addf %57, %56 : vector<8x128xf32>
    %59 = arith.divf %57, %58 : vector<8x128xf32>
    %60 = vector.extract_strided_slice %42 {offsets = [0, 256], sizes = [8, 128], strides = [1, 1]} : vector<8x384xf32> to vector<8x128xf32>
    %61 = vector.extract_strided_slice %43 {offsets = [0, 256], sizes = [8, 128], strides = [1, 1]} : vector<8x384xf32> to vector<8x128xf32>
    %62 = arith.addf %61, %3 : vector<8x128xf32>
    %63 = arith.mulf %51, %62 : vector<8x128xf32>
    %64 = arith.addf %60, %63 : vector<8x128xf32>
    %65 = math.tanh %64 : vector<8x128xf32>
    %cst_17 = arith.constant 1.000000e+00 : f32
    %66 = vector.broadcast %cst_17 : f32 to vector<8x128xf32>
    %67 = arith.subf %66, %59 : vector<8x128xf32>
    %68 = arith.mulf %67, %65 : vector<8x128xf32>
    %69 = arith.mulf %59, %35 : vector<8x128xf32>
    %70 = arith.addf %68, %69 : vector<8x128xf32>
    %71 = arith.index_cast %c1_i32 : i32 to index
    %c0_18 = arith.constant 0 : index
    %c0_19 = arith.constant 0 : index
    %72 = vector.load %arg4[%71, %c0_18, %c0_19] : memref<8x8x128xf32, #tpu.memory_space<vmem>>, vector<1x8x128xf32>
    %73 = vector.shape_cast %72 : vector<1x8x128xf32> to vector<8x128xf32>
    %74 = vector.shape_cast %70 : vector<8x128xf32> to vector<1x8x128xf32>
    tpu.vector_store %arg4[%71, %c0_18, %c0_19], %74 {strides = array<i32>} : memref<8x8x128xf32, #tpu.memory_space<vmem>>, vector<1x8x128xf32>,
    %c2_i32 = arith.constant 2 : i32
    %75 = arith.index_cast %c2_i32 : i32 to index
    %c0_20 = arith.constant 0 : index
    %c0_21 = arith.constant 0 : index
    %76 = vector.load %arg0[%75, %c0_20, %c0_21] : memref<8x8x384xf32, #tpu.memory_space<vmem>>, vector<1x8x384xf32>
    %77 = vector.shape_cast %76 : vector<1x8x384xf32> to vector<8x384xf32>
    %cst_22 = arith.constant dense<0.000000e+00> : vector<8x384xf32>
    %78 = tpu.matmul %70, %0, %cst_22 {dimension_numbers = #tpu.dot_dimension_numbers<[1], [0], [0], [1], [0, 0, 1, 1], [], []>} : vector<8x128xf32>, vector<128x384xf32>, vector<8x384xf32> -> vector<8x384xf32>
    %79 = vector.extract_strided_slice %77 {offsets = [0, 0], sizes = [8, 128], strides = [1, 1]} : vector<8x384xf32> to vector<8x128xf32>
    %80 = vector.extract_strided_slice %78 {offsets = [0, 0], sizes = [8, 128], strides = [1, 1]} : vector<8x384xf32> to vector<8x128xf32>
    %81 = arith.addf %79, %80 : vector<8x128xf32>
    %82 = arith.negf %81 : vector<8x128xf32>
    %83 = math.exp %82 : vector<8x128xf32>
    %cst_23 = arith.constant 1.000000e+00 : f32
    %84 = vector.broadcast %cst_23 : f32 to vector<8x128xf32>
    %85 = arith.addf %84, %83 : vector<8x128xf32>
    %86 = arith.divf %84, %85 : vector<8x128xf32>
    %87 = vector.extract_strided_slice %77 {offsets = [0, 128], sizes = [8, 128], strides = [1, 1]} : vector<8x384xf32> to vector<8x128xf32>
    %88 = vector.extract_strided_slice %78 {offsets = [0, 128], sizes = [8, 128], strides = [1, 1]} : vector<8x384xf32> to vector<8x128xf32>
    %89 = arith.addf %87, %88 : vector<8x128xf32>
    %90 = arith.negf %89 : vector<8x128xf32>
    %91 = math.exp %90 : vector<8x128xf32>
    %cst_24 = arith.constant 1.000000e+00 : f32
    %92 = vector.broadcast %cst_24 : f32 to vector<8x128xf32>
    %93 = arith.addf %92, %91 : vector<8x128xf32>
    %94 = arith.divf %92, %93 : vector<8x128xf32>
    %95 = vector.extract_strided_slice %77 {offsets = [0, 256], sizes = [8, 128], strides = [1, 1]} : vector<8x384xf32> to vector<8x128xf32>
    %96 = vector.extract_strided_slice %78 {offsets = [0, 256], sizes = [8, 128], strides = [1, 1]} : vector<8x384xf32> to vector<8x128xf32>
    %97 = arith.addf %96, %3 : vector<8x128xf32>
    %98 = arith.mulf %86, %97 : vector<8x128xf32>
    %99 = arith.addf %95, %98 : vector<8x128xf32>
    %100 = math.tanh %99 : vector<8x128xf32>
    %cst_25 = arith.constant 1.000000e+00 : f32
    %101 = vector.broadcast %cst_25 : f32 to vector<8x128xf32>
    %102 = arith.subf %101, %94 : vector<8x128xf32>
    %103 = arith.mulf %102, %100 : vector<8x128xf32>
    %104 = arith.mulf %94, %70 : vector<8x128xf32>
    %105 = arith.addf %103, %104 : vector<8x128xf32>
    %106 = arith.index_cast %c2_i32 : i32 to index
    %c0_26 = arith.constant 0 : index
    %c0_27 = arith.constant 0 : index
    %107 = vector.load %arg4[%106, %c0_26, %c0_27] : memref<8x8x128xf32, #tpu.memory_space<vmem>>, vector<1x8x128xf32>
    %108 = vector.shape_cast %107 : vector<1x8x128xf32> to vector<8x128xf32>
    %109 = vector.shape_cast %105 : vector<8x128xf32> to vector<1x8x128xf32>
    tpu.vector_store %arg4[%106, %c0_26, %c0_27], %109 {strides = array<i32>} : memref<8x8x128xf32, #tpu.memory_space<vmem>>, vector<1x8x128xf32>,
    %c3_i32 = arith.constant 3 : i32
    %110 = arith.index_cast %c3_i32 : i32 to index
    %c0_28 = arith.constant 0 : index
    %c0_29 = arith.constant 0 : index
    %111 = vector.load %arg0[%110, %c0_28, %c0_29] : memref<8x8x384xf32, #tpu.memory_space<vmem>>, vector<1x8x384xf32>
    %112 = vector.shape_cast %111 : vector<1x8x384xf32> to vector<8x384xf32>
    %cst_30 = arith.constant dense<0.000000e+00> : vector<8x384xf32>
    %113 = tpu.matmul %105, %0, %cst_30 {dimension_numbers = #tpu.dot_dimension_numbers<[1], [0], [0], [1], [0, 0, 1, 1], [], []>} : vector<8x128xf32>, vector<128x384xf32>, vector<8x384xf32> -> vector<8x384xf32>
    %114 = vector.extract_strided_slice %112 {offsets = [0, 0], sizes = [8, 128], strides = [1, 1]} : vector<8x384xf32> to vector<8x128xf32>
    %115 = vector.extract_strided_slice %113 {offsets = [0, 0], sizes = [8, 128], strides = [1, 1]} : vector<8x384xf32> to vector<8x128xf32>
    %116 = arith.addf %114, %115 : vector<8x128xf32>
    %117 = arith.negf %116 : vector<8x128xf32>
    %118 = math.exp %117 : vector<8x128xf32>
    %cst_31 = arith.constant 1.000000e+00 : f32
    %119 = vector.broadcast %cst_31 : f32 to vector<8x128xf32>
    %120 = arith.addf %119, %118 : vector<8x128xf32>
    %121 = arith.divf %119, %120 : vector<8x128xf32>
    %122 = vector.extract_strided_slice %112 {offsets = [0, 128], sizes = [8, 128], strides = [1, 1]} : vector<8x384xf32> to vector<8x128xf32>
    %123 = vector.extract_strided_slice %113 {offsets = [0, 128], sizes = [8, 128], strides = [1, 1]} : vector<8x384xf32> to vector<8x128xf32>
    %124 = arith.addf %122, %123 : vector<8x128xf32>
    %125 = arith.negf %124 : vector<8x128xf32>
    %126 = math.exp %125 : vector<8x128xf32>
    %cst_32 = arith.constant 1.000000e+00 : f32
    %127 = vector.broadcast %cst_32 : f32 to vector<8x128xf32>
    %128 = arith.addf %127, %126 : vector<8x128xf32>
    %129 = arith.divf %127, %128 : vector<8x128xf32>
    %130 = vector.extract_strided_slice %112 {offsets = [0, 256], sizes = [8, 128], strides = [1, 1]} : vector<8x384xf32> to vector<8x128xf32>
    %131 = vector.extract_strided_slice %113 {offsets = [0, 256], sizes = [8, 128], strides = [1, 1]} : vector<8x384xf32> to vector<8x128xf32>
    %132 = arith.addf %131, %3 : vector<8x128xf32>
    %133 = arith.mulf %121, %132 : vector<8x128xf32>
    %134 = arith.addf %130, %133 : vector<8x128xf32>
    %135 = math.tanh %134 : vector<8x128xf32>
    %cst_33 = arith.constant 1.000000e+00 : f32
    %136 = vector.broadcast %cst_33 : f32 to vector<8x128xf32>
    %137 = arith.subf %136, %129 : vector<8x128xf32>
    %138 = arith.mulf %137, %135 : vector<8x128xf32>
    %139 = arith.mulf %129, %105 : vector<8x128xf32>
    %140 = arith.addf %138, %139 : vector<8x128xf32>
    %141 = arith.index_cast %c3_i32 : i32 to index
    %c0_34 = arith.constant 0 : index
    %c0_35 = arith.constant 0 : index
    %142 = vector.load %arg4[%141, %c0_34, %c0_35] : memref<8x8x128xf32, #tpu.memory_space<vmem>>, vector<1x8x128xf32>
    %143 = vector.shape_cast %142 : vector<1x8x128xf32> to vector<8x128xf32>
    %144 = vector.shape_cast %140 : vector<8x128xf32> to vector<1x8x128xf32>
    tpu.vector_store %arg4[%141, %c0_34, %c0_35], %144 {strides = array<i32>} : memref<8x8x128xf32, #tpu.memory_space<vmem>>, vector<1x8x128xf32>,
    %c4_i32 = arith.constant 4 : i32
    %145 = arith.index_cast %c4_i32 : i32 to index
    %c0_36 = arith.constant 0 : index
    %c0_37 = arith.constant 0 : index
    %146 = vector.load %arg0[%145, %c0_36, %c0_37] : memref<8x8x384xf32, #tpu.memory_space<vmem>>, vector<1x8x384xf32>
    %147 = vector.shape_cast %146 : vector<1x8x384xf32> to vector<8x384xf32>
    %cst_38 = arith.constant dense<0.000000e+00> : vector<8x384xf32>
    %148 = tpu.matmul %140, %0, %cst_38 {dimension_numbers = #tpu.dot_dimension_numbers<[1], [0], [0], [1], [0, 0, 1, 1], [], []>} : vector<8x128xf32>, vector<128x384xf32>, vector<8x384xf32> -> vector<8x384xf32>
    %149 = vector.extract_strided_slice %147 {offsets = [0, 0], sizes = [8, 128], strides = [1, 1]} : vector<8x384xf32> to vector<8x128xf32>
    %150 = vector.extract_strided_slice %148 {offsets = [0, 0], sizes = [8, 128], strides = [1, 1]} : vector<8x384xf32> to vector<8x128xf32>
    %151 = arith.addf %149, %150 : vector<8x128xf32>
    %152 = arith.negf %151 : vector<8x128xf32>
    %153 = math.exp %152 : vector<8x128xf32>
    %cst_39 = arith.constant 1.000000e+00 : f32
    %154 = vector.broadcast %cst_39 : f32 to vector<8x128xf32>
    %155 = arith.addf %154, %153 : vector<8x128xf32>
    %156 = arith.divf %154, %155 : vector<8x128xf32>
    %157 = vector.extract_strided_slice %147 {offsets = [0, 128], sizes = [8, 128], strides = [1, 1]} : vector<8x384xf32> to vector<8x128xf32>
    %158 = vector.extract_strided_slice %148 {offsets = [0, 128], sizes = [8, 128], strides = [1, 1]} : vector<8x384xf32> to vector<8x128xf32>
    %159 = arith.addf %157, %158 : vector<8x128xf32>
    %160 = arith.negf %159 : vector<8x128xf32>
    %161 = math.exp %160 : vector<8x128xf32>
    %cst_40 = arith.constant 1.000000e+00 : f32
    %162 = vector.broadcast %cst_40 : f32 to vector<8x128xf32>
    %163 = arith.addf %162, %161 : vector<8x128xf32>
    %164 = arith.divf %162, %163 : vector<8x128xf32>
    %165 = vector.extract_strided_slice %147 {offsets = [0, 256], sizes = [8, 128], strides = [1, 1]} : vector<8x384xf32> to vector<8x128xf32>
    %166 = vector.extract_strided_slice %148 {offsets = [0, 256], sizes = [8, 128], strides = [1, 1]} : vector<8x384xf32> to vector<8x128xf32>
    %167 = arith.addf %166, %3 : vector<8x128xf32>
    %168 = arith.mulf %156, %167 : vector<8x128xf32>
    %169 = arith.addf %165, %168 : vector<8x128xf32>
    %170 = math.tanh %169 : vector<8x128xf32>
    %cst_41 = arith.constant 1.000000e+00 : f32
    %171 = vector.broadcast %cst_41 : f32 to vector<8x128xf32>
    %172 = arith.subf %171, %164 : vector<8x128xf32>
    %173 = arith.mulf %172, %170 : vector<8x128xf32>
    %174 = arith.mulf %164, %140 : vector<8x128xf32>
    %175 = arith.addf %173, %174 : vector<8x128xf32>
    %176 = arith.index_cast %c4_i32 : i32 to index
    %c0_42 = arith.constant 0 : index
    %c0_43 = arith.constant 0 : index
    %177 = vector.load %arg4[%176, %c0_42, %c0_43] : memref<8x8x128xf32, #tpu.memory_space<vmem>>, vector<1x8x128xf32>
    %178 = vector.shape_cast %177 : vector<1x8x128xf32> to vector<8x128xf32>
    %179 = vector.shape_cast %175 : vector<8x128xf32> to vector<1x8x128xf32>
    tpu.vector_store %arg4[%176, %c0_42, %c0_43], %179 {strides = array<i32>} : memref<8x8x128xf32, #tpu.memory_space<vmem>>, vector<1x8x128xf32>,
    %c5_i32 = arith.constant 5 : i32
    %180 = arith.index_cast %c5_i32 : i32 to index
    %c0_44 = arith.constant 0 : index
    %c0_45 = arith.constant 0 : index
    %181 = vector.load %arg0[%180, %c0_44, %c0_45] : memref<8x8x384xf32, #tpu.memory_space<vmem>>, vector<1x8x384xf32>
    %182 = vector.shape_cast %181 : vector<1x8x384xf32> to vector<8x384xf32>
    %cst_46 = arith.constant dense<0.000000e+00> : vector<8x384xf32>
    %183 = tpu.matmul %175, %0, %cst_46 {dimension_numbers = #tpu.dot_dimension_numbers<[1], [0], [0], [1], [0, 0, 1, 1], [], []>} : vector<8x128xf32>, vector<128x384xf32>, vector<8x384xf32> -> vector<8x384xf32>
    %184 = vector.extract_strided_slice %182 {offsets = [0, 0], sizes = [8, 128], strides = [1, 1]} : vector<8x384xf32> to vector<8x128xf32>
    %185 = vector.extract_strided_slice %183 {offsets = [0, 0], sizes = [8, 128], strides = [1, 1]} : vector<8x384xf32> to vector<8x128xf32>
    %186 = arith.addf %184, %185 : vector<8x128xf32>
    %187 = arith.negf %186 : vector<8x128xf32>
    %188 = math.exp %187 : vector<8x128xf32>
    %cst_47 = arith.constant 1.000000e+00 : f32
    %189 = vector.broadcast %cst_47 : f32 to vector<8x128xf32>
    %190 = arith.addf %189, %188 : vector<8x128xf32>
    %191 = arith.divf %189, %190 : vector<8x128xf32>
    %192 = vector.extract_strided_slice %182 {offsets = [0, 128], sizes = [8, 128], strides = [1, 1]} : vector<8x384xf32> to vector<8x128xf32>
    %193 = vector.extract_strided_slice %183 {offsets = [0, 128], sizes = [8, 128], strides = [1, 1]} : vector<8x384xf32> to vector<8x128xf32>
    %194 = arith.addf %192, %193 : vector<8x128xf32>
    %195 = arith.negf %194 : vector<8x128xf32>
    %196 = math.exp %195 : vector<8x128xf32>
    %cst_48 = arith.constant 1.000000e+00 : f32
    %197 = vector.broadcast %cst_48 : f32 to vector<8x128xf32>
    %198 = arith.addf %197, %196 : vector<8x128xf32>
    %199 = arith.divf %197, %198 : vector<8x128xf32>
    %200 = vector.extract_strided_slice %182 {offsets = [0, 256], sizes = [8, 128], strides = [1, 1]} : vector<8x384xf32> to vector<8x128xf32>
    %201 = vector.extract_strided_slice %183 {offsets = [0, 256], sizes = [8, 128], strides = [1, 1]} : vector<8x384xf32> to vector<8x128xf32>
    %202 = arith.addf %201, %3 : vector<8x128xf32>
    %203 = arith.mulf %191, %202 : vector<8x128xf32>
    %204 = arith.addf %200, %203 : vector<8x128xf32>
    %205 = math.tanh %204 : vector<8x128xf32>
    %cst_49 = arith.constant 1.000000e+00 : f32
    %206 = vector.broadcast %cst_49 : f32 to vector<8x128xf32>
    %207 = arith.subf %206, %199 : vector<8x128xf32>
    %208 = arith.mulf %207, %205 : vector<8x128xf32>
    %209 = arith.mulf %199, %175 : vector<8x128xf32>
    %210 = arith.addf %208, %209 : vector<8x128xf32>
    %211 = arith.index_cast %c5_i32 : i32 to index
    %c0_50 = arith.constant 0 : index
    %c0_51 = arith.constant 0 : index
    %212 = vector.load %arg4[%211, %c0_50, %c0_51] : memref<8x8x128xf32, #tpu.memory_space<vmem>>, vector<1x8x128xf32>
    %213 = vector.shape_cast %212 : vector<1x8x128xf32> to vector<8x128xf32>
    %214 = vector.shape_cast %210 : vector<8x128xf32> to vector<1x8x128xf32>
    tpu.vector_store %arg4[%211, %c0_50, %c0_51], %214 {strides = array<i32>} : memref<8x8x128xf32, #tpu.memory_space<vmem>>, vector<1x8x128xf32>,
    %c6_i32 = arith.constant 6 : i32
    %215 = arith.index_cast %c6_i32 : i32 to index
    %c0_52 = arith.constant 0 : index
    %c0_53 = arith.constant 0 : index
    %216 = vector.load %arg0[%215, %c0_52, %c0_53] : memref<8x8x384xf32, #tpu.memory_space<vmem>>, vector<1x8x384xf32>
    %217 = vector.shape_cast %216 : vector<1x8x384xf32> to vector<8x384xf32>
    %cst_54 = arith.constant dense<0.000000e+00> : vector<8x384xf32>
    %218 = tpu.matmul %210, %0, %cst_54 {dimension_numbers = #tpu.dot_dimension_numbers<[1], [0], [0], [1], [0, 0, 1, 1], [], []>} : vector<8x128xf32>, vector<128x384xf32>, vector<8x384xf32> -> vector<8x384xf32>
    %219 = vector.extract_strided_slice %217 {offsets = [0, 0], sizes = [8, 128], strides = [1, 1]} : vector<8x384xf32> to vector<8x128xf32>
    %220 = vector.extract_strided_slice %218 {offsets = [0, 0], sizes = [8, 128], strides = [1, 1]} : vector<8x384xf32> to vector<8x128xf32>
    %221 = arith.addf %219, %220 : vector<8x128xf32>
    %222 = arith.negf %221 : vector<8x128xf32>
    %223 = math.exp %222 : vector<8x128xf32>
    %cst_55 = arith.constant 1.000000e+00 : f32
    %224 = vector.broadcast %cst_55 : f32 to vector<8x128xf32>
    %225 = arith.addf %224, %223 : vector<8x128xf32>
    %226 = arith.divf %224, %225 : vector<8x128xf32>
    %227 = vector.extract_strided_slice %217 {offsets = [0, 128], sizes = [8, 128], strides = [1, 1]} : vector<8x384xf32> to vector<8x128xf32>
    %228 = vector.extract_strided_slice %218 {offsets = [0, 128], sizes = [8, 128], strides = [1, 1]} : vector<8x384xf32> to vector<8x128xf32>
    %229 = arith.addf %227, %228 : vector<8x128xf32>
    %230 = arith.negf %229 : vector<8x128xf32>
    %231 = math.exp %230 : vector<8x128xf32>
    %cst_56 = arith.constant 1.000000e+00 : f32
    %232 = vector.broadcast %cst_56 : f32 to vector<8x128xf32>
    %233 = arith.addf %232, %231 : vector<8x128xf32>
    %234 = arith.divf %232, %233 : vector<8x128xf32>
    %235 = vector.extract_strided_slice %217 {offsets = [0, 256], sizes = [8, 128], strides = [1, 1]} : vector<8x384xf32> to vector<8x128xf32>
    %236 = vector.extract_strided_slice %218 {offsets = [0, 256], sizes = [8, 128], strides = [1, 1]} : vector<8x384xf32> to vector<8x128xf32>
    %237 = arith.addf %236, %3 : vector<8x128xf32>
    %238 = arith.mulf %226, %237 : vector<8x128xf32>
    %239 = arith.addf %235, %238 : vector<8x128xf32>
    %240 = math.tanh %239 : vector<8x128xf32>
    %cst_57 = arith.constant 1.000000e+00 : f32
    %241 = vector.broadcast %cst_57 : f32 to vector<8x128xf32>
    %242 = arith.subf %241, %234 : vector<8x128xf32>
    %243 = arith.mulf %242, %240 : vector<8x128xf32>
    %244 = arith.mulf %234, %210 : vector<8x128xf32>
    %245 = arith.addf %243, %244 : vector<8x128xf32>
    %246 = arith.index_cast %c6_i32 : i32 to index
    %c0_58 = arith.constant 0 : index
    %c0_59 = arith.constant 0 : index
    %247 = vector.load %arg4[%246, %c0_58, %c0_59] : memref<8x8x128xf32, #tpu.memory_space<vmem>>, vector<1x8x128xf32>
    %248 = vector.shape_cast %247 : vector<1x8x128xf32> to vector<8x128xf32>
    %249 = vector.shape_cast %245 : vector<8x128xf32> to vector<1x8x128xf32>
    tpu.vector_store %arg4[%246, %c0_58, %c0_59], %249 {strides = array<i32>} : memref<8x8x128xf32, #tpu.memory_space<vmem>>, vector<1x8x128xf32>,
    %c7_i32 = arith.constant 7 : i32
    %250 = arith.index_cast %c7_i32 : i32 to index
    %c0_60 = arith.constant 0 : index
    %c0_61 = arith.constant 0 : index
    %251 = vector.load %arg0[%250, %c0_60, %c0_61] : memref<8x8x384xf32, #tpu.memory_space<vmem>>, vector<1x8x384xf32>
    %252 = vector.shape_cast %251 : vector<1x8x384xf32> to vector<8x384xf32>
    %cst_62 = arith.constant dense<0.000000e+00> : vector<8x384xf32>
    %253 = tpu.matmul %245, %0, %cst_62 {dimension_numbers = #tpu.dot_dimension_numbers<[1], [0], [0], [1], [0, 0, 1, 1], [], []>} : vector<8x128xf32>, vector<128x384xf32>, vector<8x384xf32> -> vector<8x384xf32>
    %254 = vector.extract_strided_slice %252 {offsets = [0, 0], sizes = [8, 128], strides = [1, 1]} : vector<8x384xf32> to vector<8x128xf32>
    %255 = vector.extract_strided_slice %253 {offsets = [0, 0], sizes = [8, 128], strides = [1, 1]} : vector<8x384xf32> to vector<8x128xf32>
    %256 = arith.addf %254, %255 : vector<8x128xf32>
    %257 = arith.negf %256 : vector<8x128xf32>
    %258 = math.exp %257 : vector<8x128xf32>
    %cst_63 = arith.constant 1.000000e+00 : f32
    %259 = vector.broadcast %cst_63 : f32 to vector<8x128xf32>
    %260 = arith.addf %259, %258 : vector<8x128xf32>
    %261 = arith.divf %259, %260 : vector<8x128xf32>
    %262 = vector.extract_strided_slice %252 {offsets = [0, 128], sizes = [8, 128], strides = [1, 1]} : vector<8x384xf32> to vector<8x128xf32>
    %263 = vector.extract_strided_slice %253 {offsets = [0, 128], sizes = [8, 128], strides = [1, 1]} : vector<8x384xf32> to vector<8x128xf32>
    %264 = arith.addf %262, %263 : vector<8x128xf32>
    %265 = arith.negf %264 : vector<8x128xf32>
    %266 = math.exp %265 : vector<8x128xf32>
    %cst_64 = arith.constant 1.000000e+00 : f32
    %267 = vector.broadcast %cst_64 : f32 to vector<8x128xf32>
    %268 = arith.addf %267, %266 : vector<8x128xf32>
    %269 = arith.divf %267, %268 : vector<8x128xf32>
    %270 = vector.extract_strided_slice %252 {offsets = [0, 256], sizes = [8, 128], strides = [1, 1]} : vector<8x384xf32> to vector<8x128xf32>
    %271 = vector.extract_strided_slice %253 {offsets = [0, 256], sizes = [8, 128], strides = [1, 1]} : vector<8x384xf32> to vector<8x128xf32>
    %272 = arith.addf %271, %3 : vector<8x128xf32>
    %273 = arith.mulf %261, %272 : vector<8x128xf32>
    %274 = arith.addf %270, %273 : vector<8x128xf32>
    %275 = math.tanh %274 : vector<8x128xf32>
    %cst_65 = arith.constant 1.000000e+00 : f32
    %276 = vector.broadcast %cst_65 : f32 to vector<8x128xf32>
    %277 = arith.subf %276, %269 : vector<8x128xf32>
    %278 = arith.mulf %277, %275 : vector<8x128xf32>
    %279 = arith.mulf %269, %245 : vector<8x128xf32>
    %280 = arith.addf %278, %279 : vector<8x128xf32>
    %281 = arith.index_cast %c7_i32 : i32 to index
    %c0_66 = arith.constant 0 : index
    %c0_67 = arith.constant 0 : index
    %282 = vector.load %arg4[%281, %c0_66, %c0_67] : memref<8x8x128xf32, #tpu.memory_space<vmem>>, vector<1x8x128xf32>
    %283 = vector.shape_cast %282 : vector<1x8x128xf32> to vector<8x128xf32>
    %284 = vector.shape_cast %280 : vector<8x128xf32> to vector<1x8x128xf32>
    tpu.vector_store %arg4[%281, %c0_66, %c0_67], %284 {strides = array<i32>} : memref<8x8x128xf32, #tpu.memory_space<vmem>>, vector<1x8x128xf32>,
    %c8_i32 = arith.constant 8 : i32
    return
  }
}

</mosaic_0001>

<llo_original>
// kernel: _encoder_core.1
$region0: #{_encoder_core.1}
  #allocation0 [shape = 'u32[]', space=smem, size = 0x4, offset = 0x4, fixed_abs, tag = 'smem constant byte address 0x4 - core index']
  #allocation1 [shape = 'u32[72,128]{1,0:T(1,128)}', space=vmem, size = 0x9000, scoped, tag = 'internal scratch']
  %s0 = inlined_call_operand.vmem [shape: f32[8,8,384], index: 0, kind: input, shape index: {}]
  %s1 = inlined_call_operand.vmem [shape: f32[8,128], index: 1, kind: input, shape index: {}]
  %s2 = inlined_call_operand.vmem [shape: f32[128,384], index: 2, kind: input, shape index: {}]
  %s3 = inlined_call_operand.vmem [shape: f32[1,128], index: 3, kind: input, shape index: {}]
  %s4 = inlined_call_operand.vmem [shape: f32[8,8,128], index: 4, kind: output, shape index: {}]
  %s5 = sld [smem:[#allocation0]]
  $region26: #{_encoder_core.1} parent=0
    _
  %s7 = ssub.s32 1, %s5
  %s8 = scalar_select 0, %s7, %s5
  // Predicated region
  $region2: #{_encoder_core.1} parent=0 // pred_check
    _
  $region3: #{_encoder_core.1} parent=0 // pred_check_branch
    %10 = sbr.rel (0) target = $region5
  $region4: #{_encoder_core.1} parent=0 // pred_region
    _
  $region5: #{_encoder_core.1} parent=0 // pred_fallthru
    _
  // Predicated region
  $region6: #{_encoder_core.1} parent=0 // pred_check
    _
  $region7: #{_encoder_core.1} parent=0 // pred_check_branch
    %12 = sbr.rel (0) target = $region9
  $region8: #{_encoder_core.1} parent=0 // pred_region
    _
  $region9: #{_encoder_core.1} parent=0 // pred_fallthru
    _
  // Predicated region
  $region10: #{_encoder_core.1} parent=0 // pred_check
    _
  $region11: #{_encoder_core.1} parent=0 // pred_check_branch
    %14 = sbr.rel (0) target = $region13
  $region12: #{_encoder_core.1} parent=0 // pred_region
    _
  $region13: #{_encoder_core.1} parent=0 // pred_fallthru
    _
  // Predicated region
  $region14: #{_encoder_core.1} parent=0 // pred_check
    _
  $region15: #{_encoder_core.1} parent=0 // pred_check_branch
    %16 = sbr.rel (0) target = $region17
  $region16: #{_encoder_core.1} parent=0 // pred_region
    _
  $region17: #{_encoder_core.1} parent=0 // pred_fallthru
    _
  %v17 = vld [vmem:[%s2] sm:$0xff]
  %v18 = vld [vmem:[%s2 + $0x8] sm:$0xff]
  %v19 = vld [vmem:[%s2 + $0x10] sm:$0xff]
  %v20 = vld [vmem:[%s2 + $0x18] sm:$0xff]
  %v21 = vld [vmem:[%s2 + $0x20] sm:$0xff]
  %v22 = vld [vmem:[%s2 + $0x28] sm:$0xff]
  %v23 = vld [vmem:[%s2 + $0x30] sm:$0xff]
  %v24 = vld [vmem:[%s2 + $0x38] sm:$0xff]
  %v25 = vld [vmem:[%s2 + $0x40] sm:$0xff]
  %v26 = vld [vmem:[%s2 + $0x48] sm:$0xff]
  %v27 = vld [vmem:[%s2 + $0x50] sm:$0xff]
  %v28 = vld [vmem:[%s2 + $0x58] sm:$0xff]
  %v29 = vld [vmem:[%s2 + $0x60] sm:$0xff]
  %v30 = vld [vmem:[%s2 + $0x68] sm:$0xff]
  %v31 = vld [vmem:[%s2 + $0x70] sm:$0xff]
  %v32 = vld [vmem:[%s2 + $0x78] sm:$0xff]
  %v33 = vld [vmem:[%s2 + $0x80] sm:$0xff]
  %v34 = vld [vmem:[%s2 + $0x88] sm:$0xff]
  %v35 = vld [vmem:[%s2 + $0x90] sm:$0xff]
  %v36 = vld [vmem:[%s2 + $0x98] sm:$0xff]
  %v37 = vld [vmem:[%s2 + $0xa0] sm:$0xff]
  %v38 = vld [vmem:[%s2 + $0xa8] sm:$0xff]
  %v39 = vld [vmem:[%s2 + $0xb0] sm:$0xff]
  %v40 = vld [vmem:[%s2 + $0xb8] sm:$0xff]
  %v41 = vld [vmem:[%s2 + $0xc0] sm:$0xff]
  %v42 = vld [vmem:[%s2 + $0xc8] sm:$0xff]
  %v43 = vld [vmem:[%s2 + $0xd0] sm:$0xff]
  %v44 = vld [vmem:[%s2 + $0xd8] sm:$0xff]
  %v45 = vld [vmem:[%s2 + $0xe0] sm:$0xff]
  %v46 = vld [vmem:[%s2 + $0xe8] sm:$0xff]
  %v47 = vld [vmem:[%s2 + $0xf0] sm:$0xff]
  %v48 = vld [vmem:[%s2 + $0xf8] sm:$0xff]
  %v49 = vld [vmem:[%s2 + $0x100] sm:$0xff]
  %v50 = vld [vmem:[%s2 + $0x108] sm:$0xff]
  %v51 = vld [vmem:[%s2 + $0x110] sm:$0xff]
  %v52 = vld [vmem:[%s2 + $0x118] sm:$0xff]
  %v53 = vld [vmem:[%s2 + $0x120] sm:$0xff]
  %v54 = vld [vmem:[%s2 + $0x128] sm:$0xff]
  %v55 = vld [vmem:[%s2 + $0x130] sm:$0xff]
  %v56 = vld [vmem:[%s2 + $0x138] sm:$0xff]
  %v57 = vld [vmem:[%s2 + $0x140] sm:$0xff]
  %v58 = vld [vmem:[%s2 + $0x148] sm:$0xff]
  %v59 = vld [vmem:[%s2 + $0x150] sm:$0xff]
  %v60 = vld [vmem:[%s2 + $0x158] sm:$0xff]
  %v61 = vld [vmem:[%s2 + $0x160] sm:$0xff]
  %v62 = vld [vmem:[%s2 + $0x168] sm:$0xff]
  %v63 = vld [vmem:[%s2 + $0x170] sm:$0xff]
  %v64 = vld [vmem:[%s2 + $0x178] sm:$0xff]
  %v65 = vld [vmem:[%s3] sm:$0x1]
  %v67 = vperm.slane %v65, 0
  %v69 = vld [vmem:[%s1] sm:$0xff]
  %v70 = vld [vmem:[%s0] sm:$0xff]
  %v71 = vld [vmem:[%s0 + $0x8] sm:$0xff]
  %v72 = vld [vmem:[%s0 + $0x10] sm:$0xff]
  %73 = vmatpush.msra.mxu0 %v62
  %74 = vmatpush.msra.mxu0 %v59
  %75 = vmatpush.msra.mxu0 %v56
  %76 = vmatpush.msra.mxu0 %v53
  %77 = vmatpush.msra.mxu0 %v50
  %78 = vmatpush.msra.mxu0 %v47
  %79 = vmatpush.msra.mxu0 %v44
  %80 = vmatpush.msra.mxu0 %v41
  %81 = vmatpush.msra.mxu0 %v38
  %82 = vmatpush.msra.mxu0 %v35
  %83 = vmatpush.msra.mxu0 %v32
  %84 = vmatpush.msra.mxu0 %v29
  %85 = vmatpush.msra.mxu0 %v26
  %86 = vmatpush.msra.mxu0 %v23
  %87 = vmatpush.msra.mxu0 %v20
  %88 = vmatpush.msra.mxu0 %v17
  %89 = vmatmul.f32.gmra.mxu0 %v69
  %v90 = vpop.f32.mrf.mxu0
  %v91 = vadd.f32 0.0, %v90
  %92 = vdwg.mxu0
  %93 = vmatpush.msra.mxu0 %v63
  %94 = vmatpush.msra.mxu0 %v60
  %95 = vmatpush.msra.mxu0 %v57
  %96 = vmatpush.msra.mxu0 %v54
  %97 = vmatpush.msra.mxu0 %v51
  %98 = vmatpush.msra.mxu0 %v48
  %99 = vmatpush.msra.mxu0 %v45
  %100 = vmatpush.msra.mxu0 %v42
  %101 = vmatpush.msra.mxu0 %v39
  %102 = vmatpush.msra.mxu0 %v36
  %103 = vmatpush.msra.mxu0 %v33
  %104 = vmatpush.msra.mxu0 %v30
  %105 = vmatpush.msra.mxu0 %v27
  %106 = vmatpush.msra.mxu0 %v24
  %107 = vmatpush.msra.mxu0 %v21
  %108 = vmatpush.msra.mxu0 %v18
  %109 = vmatmul.f32.gmra.mxu0 %v69
  %v110 = vpop.f32.mrf.mxu0
  %v111 = vadd.f32 0.0, %v110
  %112 = vdwg.mxu0
  %113 = vmatpush.msra.mxu0 %v64
  %114 = vmatpush.msra.mxu0 %v61
  %115 = vmatpush.msra.mxu0 %v58
  %116 = vmatpush.msra.mxu0 %v55
  %117 = vmatpush.msra.mxu0 %v52
  %118 = vmatpush.msra.mxu0 %v49
  %119 = vmatpush.msra.mxu0 %v46
  %120 = vmatpush.msra.mxu0 %v43
  %121 = vmatpush.msra.mxu0 %v40
  %122 = vmatpush.msra.mxu0 %v37
  %123 = vmatpush.msra.mxu0 %v34
  %124 = vmatpush.msra.mxu0 %v31
  %125 = vmatpush.msra.mxu0 %v28
  %126 = vmatpush.msra.mxu0 %v25
  %127 = vmatpush.msra.mxu0 %v22
  %128 = vmatpush.msra.mxu0 %v19
  %129 = vmatmul.f32.gmra.mxu0 %v69
  %v130 = vpop.f32.mrf.mxu0
  %v131 = vadd.f32 0.0, %v130
  %132 = vdwg.mxu0
  %v133 = vadd.f32 %v70, %v91
  %v134 = vxor.u32 %v133, 2147483648
  %v135 = vmul.f32 %v134, 1.442695
  %v136 = vpow.pop %v135
  %v137 = vadd.f32 %v136, 1.0
  %v138 = vrcp.pop %v137
  %v139 = vmul.f32 %v137, %v138
  %v140 = vsub.f32 1.0, %v139
  %v141 = vmul.f32 %v138, %v140
  %v142 = vadd.f32 %v138, %v141
  %vm143 = vweird.f32 %v137
  %vm144 = vweird.f32 %v138
  %vm145 = vmor %vm143, %vm144
  %v146 = vsel %vm145, %v138, %v142
  %v147 = vand.u32 2147483647, %v137
  %vm148 = vcmp.eq.f32.partialorder %v147, 8.507059e+37
  %v149 = vand.u32 %v137, 2147483648
  %v150 = vor.u32 1.1754944e-38, %v149
  %v151 = vsel %vm148, %v150, %v146
  %v152 = vmul.f32 1.0, %v151
  %v153 = vadd.f32 %v71, %v111
  %v154 = vxor.u32 %v153, 2147483648
  %v155 = vmul.f32 %v154, 1.442695
  %v156 = vpow.pop %v155
  %v157 = vadd.f32 %v156, 1.0
  %v158 = vrcp.pop %v157
  %v159 = vmul.f32 %v157, %v158
  %v160 = vsub.f32 1.0, %v159
  %v161 = vmul.f32 %v158, %v160
  %v162 = vadd.f32 %v158, %v161
  %vm163 = vweird.f32 %v157
  %vm164 = vweird.f32 %v158
  %vm165 = vmor %vm163, %vm164
  %v166 = vsel %vm165, %v158, %v162
  %v167 = vand.u32 2147483647, %v157
  %vm168 = vcmp.eq.f32.partialorder %v167, 8.507059e+37
  %v169 = vand.u32 %v157, 2147483648
  %v170 = vor.u32 1.1754944e-38, %v169
  %v171 = vsel %vm168, %v170, %v166
  %v172 = vmul.f32 1.0, %v171
  %v173 = vadd.f32 %v131, %v67
  %v174 = vmul.f32 %v152, %v173
  %v175 = vadd.f32 %v72, %v174
  %v176 = vtanh.pop %v175
  %v177 = vsub.f32 1.0, %v172
  %v178 = vmul.f32 %v177, %v176
  %v179 = vmul.f32 %v172, %v69
  %v180 = vadd.f32 %v178, %v179
  %181 = vst [vmem:[%s4] sm:$0xff] %v180
  %s182 = scalar_lea.vmem %s0, 24
  %v183 = vld [vmem:[%s182] sm:$0xff]
  %v184 = vld [vmem:[%s182 + $0x8] sm:$0xff]
  %v185 = vld [vmem:[%s182 + $0x10] sm:$0xff]
  %186 = vmatpush.msra.mxu0 %v62
  %187 = vmatpush.msra.mxu0 %v59
  %188 = vmatpush.msra.mxu0 %v56
  %189 = vmatpush.msra.mxu0 %v53
  %190 = vmatpush.msra.mxu0 %v50
  %191 = vmatpush.msra.mxu0 %v47
  %192 = vmatpush.msra.mxu0 %v44
  %193 = vmatpush.msra.mxu0 %v41
  %194 = vmatpush.msra.mxu0 %v38
  %195 = vmatpush.msra.mxu0 %v35
  %196 = vmatpush.msra.mxu0 %v32
  %197 = vmatpush.msra.mxu0 %v29
  %198 = vmatpush.msra.mxu0 %v26
  %199 = vmatpush.msra.mxu0 %v23
  %200 = vmatpush.msra.mxu0 %v20
  %201 = vmatpush.msra.mxu0 %v17
  %202 = vmatmul.f32.gmra.mxu0 %v180
  %v203 = vpop.f32.mrf.mxu0
  %v204 = vadd.f32 0.0, %v203
  %205 = vdwg.mxu0
  %206 = vmatpush.msra.mxu0 %v63
  %207 = vmatpush.msra.mxu0 %v60
  %208 = vmatpush.msra.mxu0 %v57
  %209 = vmatpush.msra.mxu0 %v54
  %210 = vmatpush.msra.mxu0 %v51
  %211 = vmatpush.msra.mxu0 %v48
  %212 = vmatpush.msra.mxu0 %v45
  %213 = vmatpush.msra.mxu0 %v42
  %214 = vmatpush.msra.mxu0 %v39
  %215 = vmatpush.msra.mxu0 %v36
  %216 = vmatpush.msra.mxu0 %v33
  %217 = vmatpush.msra.mxu0 %v30
  %218 = vmatpush.msra.mxu0 %v27
  %219 = vmatpush.msra.mxu0 %v24
  %220 = vmatpush.msra.mxu0 %v21
  %221 = vmatpush.msra.mxu0 %v18
  %222 = vmatmul.f32.gmra.mxu0 %v180
  %v223 = vpop.f32.mrf.mxu0
  %v224 = vadd.f32 0.0, %v223
  %225 = vdwg.mxu0
  %226 = vmatpush.msra.mxu0 %v64
  %227 = vmatpush.msra.mxu0 %v61
  %228 = vmatpush.msra.mxu0 %v58
  %229 = vmatpush.msra.mxu0 %v55
  %230 = vmatpush.msra.mxu0 %v52
  %231 = vmatpush.msra.mxu0 %v49
  %232 = vmatpush.msra.mxu0 %v46
  %233 = vmatpush.msra.mxu0 %v43
  %234 = vmatpush.msra.mxu0 %v40
  %235 = vmatpush.msra.mxu0 %v37
  %236 = vmatpush.msra.mxu0 %v34
  %237 = vmatpush.msra.mxu0 %v31
  %238 = vmatpush.msra.mxu0 %v28
  %239 = vmatpush.msra.mxu0 %v25
  %240 = vmatpush.msra.mxu0 %v22
  %241 = vmatpush.msra.mxu0 %v19
  %242 = vmatmul.f32.gmra.mxu0 %v180
  %v243 = vpop.f32.mrf.mxu0
  %v244 = vadd.f32 0.0, %v243
  %245 = vdwg.mxu0
  %v246 = vadd.f32 %v183, %v204
  %v247 = vxor.u32 %v246, 2147483648
  %v248 = vmul.f32 %v247, 1.442695
  %v249 = vpow.pop %v248
  %v250 = vadd.f32 %v249, 1.0
  %v251 = vrcp.pop %v250
  %v252 = vmul.f32 %v250, %v251
  %v253 = vsub.f32 1.0, %v252
  %v254 = vmul.f32 %v251, %v253
  %v255 = vadd.f32 %v251, %v254
  %vm256 = vweird.f32 %v250
  %vm257 = vweird.f32 %v251
  %vm258 = vmor %vm256, %vm257
  %v259 = vsel %vm258, %v251, %v255
  %v260 = vand.u32 2147483647, %v250
  %vm261 = vcmp.eq.f32.partialorder %v260, 8.507059e+37
  %v262 = vand.u32 %v250, 2147483648
  %v263 = vor.u32 1.1754944e-38, %v262
  %v264 = vsel %vm261, %v263, %v259
  %v265 = vmul.f32 1.0, %v264
  %v266 = vadd.f32 %v184, %v224
  %v267 = vxor.u32 %v266, 2147483648
  %v268 = vmul.f32 %v267, 1.442695
  %v269 = vpow.pop %v268
  %v270 = vadd.f32 %v269, 1.0
  %v271 = vrcp.pop %v270
  %v272 = vmul.f32 %v270, %v271
  %v273 = vsub.f32 1.0, %v272
  %v274 = vmul.f32 %v271, %v273
  %v275 = vadd.f32 %v271, %v274
  %vm276 = vweird.f32 %v270
  %vm277 = vweird.f32 %v271
  %vm278 = vmor %vm276, %vm277
  %v279 = vsel %vm278, %v271, %v275
  %v280 = vand.u32 2147483647, %v270
  %vm281 = vcmp.eq.f32.partialorder %v280, 8.507059e+37
  %v282 = vand.u32 %v270, 2147483648
  %v283 = vor.u32 1.1754944e-38, %v282
  %v284 = vsel %vm281, %v283, %v279
  %v285 = vmul.f32 1.0, %v284
  %v286 = vadd.f32 %v244, %v67
  %v287 = vmul.f32 %v265, %v286
  %v288 = vadd.f32 %v185, %v287
  %v289 = vtanh.pop %v288
  %v290 = vsub.f32 1.0, %v285
  %v291 = vmul.f32 %v290, %v289
  %v292 = vmul.f32 %v285, %v180
  %v293 = vadd.f32 %v291, %v292
  %s294 = scalar_lea.vmem %s4, 8
  %295 = vst [vmem:[%s294] sm:$0xff] %v293
  %s296 = scalar_lea.vmem %s0, 48
  %v297 = vld [vmem:[%s296] sm:$0xff]
  %v298 = vld [vmem:[%s296 + $0x8] sm:$0xff]
  %v299 = vld [vmem:[%s296 + $0x10] sm:$0xff]
  %300 = vmatpush.msra.mxu0 %v62
  %301 = vmatpush.msra.mxu0 %v59
  %302 = vmatpush.msra.mxu0 %v56
  %303 = vmatpush.msra.mxu0 %v53
  %304 = vmatpush.msra.mxu0 %v50
  %305 = vmatpush.msra.mxu0 %v47
  %306 = vmatpush.msra.mxu0 %v44
  %307 = vmatpush.msra.mxu0 %v41
  %308 = vmatpush.msra.mxu0 %v38
  %309 = vmatpush.msra.mxu0 %v35
  %310 = vmatpush.msra.mxu0 %v32
  %311 = vmatpush.msra.mxu0 %v29
  %312 = vmatpush.msra.mxu0 %v26
  %313 = vmatpush.msra.mxu0 %v23
  %314 = vmatpush.msra.mxu0 %v20
  %315 = vmatpush.msra.mxu0 %v17
  %316 = vmatmul.f32.gmra.mxu0 %v293
  %v317 = vpop.f32.mrf.mxu0
  %v318 = vadd.f32 0.0, %v317
  %319 = vdwg.mxu0
  %320 = vmatpush.msra.mxu0 %v63
  %321 = vmatpush.msra.mxu0 %v60
  %322 = vmatpush.msra.mxu0 %v57
  %323 = vmatpush.msra.mxu0 %v54
  %324 = vmatpush.msra.mxu0 %v51
  %325 = vmatpush.msra.mxu0 %v48
  %326 = vmatpush.msra.mxu0 %v45
  %327 = vmatpush.msra.mxu0 %v42
  %328 = vmatpush.msra.mxu0 %v39
  %329 = vmatpush.msra.mxu0 %v36
  %330 = vmatpush.msra.mxu0 %v33
  %331 = vmatpush.msra.mxu0 %v30
  %332 = vmatpush.msra.mxu0 %v27
  %333 = vmatpush.msra.mxu0 %v24
  %334 = vmatpush.msra.mxu0 %v21
  %335 = vmatpush.msra.mxu0 %v18
  %336 = vmatmul.f32.gmra.mxu0 %v293
  %v337 = vpop.f32.mrf.mxu0
  %v338 = vadd.f32 0.0, %v337
  %339 = vdwg.mxu0
  %340 = vmatpush.msra.mxu0 %v64
  %341 = vmatpush.msra.mxu0 %v61
  %342 = vmatpush.msra.mxu0 %v58
  %343 = vmatpush.msra.mxu0 %v55
  %344 = vmatpush.msra.mxu0 %v52
  %345 = vmatpush.msra.mxu0 %v49
  %346 = vmatpush.msra.mxu0 %v46
  %347 = vmatpush.msra.mxu0 %v43
  %348 = vmatpush.msra.mxu0 %v40
  %349 = vmatpush.msra.mxu0 %v37
  %350 = vmatpush.msra.mxu0 %v34
  %351 = vmatpush.msra.mxu0 %v31
  %352 = vmatpush.msra.mxu0 %v28
  %353 = vmatpush.msra.mxu0 %v25
  %354 = vmatpush.msra.mxu0 %v22
  %355 = vmatpush.msra.mxu0 %v19
  %356 = vmatmul.f32.gmra.mxu0 %v293
  %v357 = vpop.f32.mrf.mxu0
  %v358 = vadd.f32 0.0, %v357
  %359 = vdwg.mxu0
  %v360 = vadd.f32 %v297, %v318
  %v361 = vxor.u32 %v360, 2147483648
  %v362 = vmul.f32 %v361, 1.442695
  %v363 = vpow.pop %v362
  %v364 = vadd.f32 %v363, 1.0
  %v365 = vrcp.pop %v364
  %v366 = vmul.f32 %v364, %v365
  %v367 = vsub.f32 1.0, %v366
  %v368 = vmul.f32 %v365, %v367
  %v369 = vadd.f32 %v365, %v368
  %vm370 = vweird.f32 %v364
  %vm371 = vweird.f32 %v365
  %vm372 = vmor %vm370, %vm371
  %v373 = vsel %vm372, %v365, %v369
  %v374 = vand.u32 2147483647, %v364
  %vm375 = vcmp.eq.f32.partialorder %v374, 8.507059e+37
  %v376 = vand.u32 %v364, 2147483648
  %v377 = vor.u32 1.1754944e-38, %v376
  %v378 = vsel %vm375, %v377, %v373
  %v379 = vmul.f32 1.0, %v378
  %v380 = vadd.f32 %v298, %v338
  %v381 = vxor.u32 %v380, 2147483648
  %v382 = vmul.f32 %v381, 1.442695
  %v383 = vpow.pop %v382
  %v384 = vadd.f32 %v383, 1.0
  %v385 = vrcp.pop %v384
  %v386 = vmul.f32 %v384, %v385
  %v387 = vsub.f32 1.0, %v386
  %v388 = vmul.f32 %v385, %v387
  %v389 = vadd.f32 %v385, %v388
  %vm390 = vweird.f32 %v384
  %vm391 = vweird.f32 %v385
  %vm392 = vmor %vm390, %vm391
  %v393 = vsel %vm392, %v385, %v389
  %v394 = vand.u32 2147483647, %v384
  %vm395 = vcmp.eq.f32.partialorder %v394, 8.507059e+37
  %v396 = vand.u32 %v384, 2147483648
  %v397 = vor.u32 1.1754944e-38, %v396
  %v398 = vsel %vm395, %v397, %v393
  %v399 = vmul.f32 1.0, %v398
  %v400 = vadd.f32 %v358, %v67
  %v401 = vmul.f32 %v379, %v400
  %v402 = vadd.f32 %v299, %v401
  %v403 = vtanh.pop %v402
  %v404 = vsub.f32 1.0, %v399
  %v405 = vmul.f32 %v404, %v403
  %v406 = vmul.f32 %v399, %v293
  %v407 = vadd.f32 %v405, %v406
  %s408 = scalar_lea.vmem %s4, 16
  %409 = vst [vmem:[%s408] sm:$0xff] %v407
  %s410 = scalar_lea.vmem %s0, 72
  %v411 = vld [vmem:[%s410] sm:$0xff]
  %v412 = vld [vmem:[%s410 + $0x8] sm:$0xff]
  %v413 = vld [vmem:[%s410 + $0x10] sm:$0xff]
  %414 = vmatpush.msra.mxu0 %v62
  %415 = vmatpush.msra.mxu0 %v59
  %416 = vmatpush.msra.mxu0 %v56
  %417 = vmatpush.msra.mxu0 %v53
  %418 = vmatpush.msra.mxu0 %v50
  %419 = vmatpush.msra.mxu0 %v47
  %420 = vmatpush.msra.mxu0 %v44
  %421 = vmatpush.msra.mxu0 %v41
  %422 = vmatpush.msra.mxu0 %v38
  %423 = vmatpush.msra.mxu0 %v35
  %424 = vmatpush.msra.mxu0 %v32
  %425 = vmatpush.msra.mxu0 %v29
  %426 = vmatpush.msra.mxu0 %v26
  %427 = vmatpush.msra.mxu0 %v23
  %428 = vmatpush.msra.mxu0 %v20
  %429 = vmatpush.msra.mxu0 %v17
  %430 = vmatmul.f32.gmra.mxu0 %v407
  %v431 = vpop.f32.mrf.mxu0
  %v432 = vadd.f32 0.0, %v431
  %433 = vdwg.mxu0
  %434 = vmatpush.msra.mxu0 %v63
  %435 = vmatpush.msra.mxu0 %v60
  %436 = vmatpush.msra.mxu0 %v57
  %437 = vmatpush.msra.mxu0 %v54
  %438 = vmatpush.msra.mxu0 %v51
  %439 = vmatpush.msra.mxu0 %v48
  %440 = vmatpush.msra.mxu0 %v45
  %441 = vmatpush.msra.mxu0 %v42
  %442 = vmatpush.msra.mxu0 %v39
  %443 = vmatpush.msra.mxu0 %v36
  %444 = vmatpush.msra.mxu0 %v33
  %445 = vmatpush.msra.mxu0 %v30
  %446 = vmatpush.msra.mxu0 %v27
  %447 = vmatpush.msra.mxu0 %v24
  %448 = vmatpush.msra.mxu0 %v21
  %449 = vmatpush.msra.mxu0 %v18
  %450 = vmatmul.f32.gmra.mxu0 %v407
  %v451 = vpop.f32.mrf.mxu0
  %v452 = vadd.f32 0.0, %v451
  %453 = vdwg.mxu0
  %454 = vmatpush.msra.mxu0 %v64
  %455 = vmatpush.msra.mxu0 %v61
  %456 = vmatpush.msra.mxu0 %v58
  %457 = vmatpush.msra.mxu0 %v55
  %458 = vmatpush.msra.mxu0 %v52
  %459 = vmatpush.msra.mxu0 %v49
  %460 = vmatpush.msra.mxu0 %v46
  %461 = vmatpush.msra.mxu0 %v43
  %462 = vmatpush.msra.mxu0 %v40
  %463 = vmatpush.msra.mxu0 %v37
  %464 = vmatpush.msra.mxu0 %v34
  %465 = vmatpush.msra.mxu0 %v31
  %466 = vmatpush.msra.mxu0 %v28
  %467 = vmatpush.msra.mxu0 %v25
  %468 = vmatpush.msra.mxu0 %v22
  %469 = vmatpush.msra.mxu0 %v19
  %470 = vmatmul.f32.gmra.mxu0 %v407
  %v471 = vpop.f32.mrf.mxu0
  %v472 = vadd.f32 0.0, %v471
  %473 = vdwg.mxu0
  %v474 = vadd.f32 %v411, %v432
  %v475 = vxor.u32 %v474, 2147483648
  %v476 = vmul.f32 %v475, 1.442695
  %v477 = vpow.pop %v476
  %v478 = vadd.f32 %v477, 1.0
  %v479 = vrcp.pop %v478
  %v480 = vmul.f32 %v478, %v479
  %v481 = vsub.f32 1.0, %v480
  %v482 = vmul.f32 %v479, %v481
  %v483 = vadd.f32 %v479, %v482
  %vm484 = vweird.f32 %v478
  %vm485 = vweird.f32 %v479
  %vm486 = vmor %vm484, %vm485
  %v487 = vsel %vm486, %v479, %v483
  %v488 = vand.u32 2147483647, %v478
  %vm489 = vcmp.eq.f32.partialorder %v488, 8.507059e+37
  %v490 = vand.u32 %v478, 2147483648
  %v491 = vor.u32 1.1754944e-38, %v490
  %v492 = vsel %vm489, %v491, %v487
  %v493 = vmul.f32 1.0, %v492
  %v494 = vadd.f32 %v412, %v452
  %v495 = vxor.u32 %v494, 2147483648
  %v496 = vmul.f32 %v495, 1.442695
  %v497 = vpow.pop %v496
  %v498 = vadd.f32 %v497, 1.0
  %v499 = vrcp.pop %v498
  %v500 = vmul.f32 %v498, %v499
  %v501 = vsub.f32 1.0, %v500
  %v502 = vmul.f32 %v499, %v501
  %v503 = vadd.f32 %v499, %v502
  %vm504 = vweird.f32 %v498
  %vm505 = vweird.f32 %v499
  %vm506 = vmor %vm504, %vm505
  %v507 = vsel %vm506, %v499, %v503
  %v508 = vand.u32 2147483647, %v498
  %vm509 = vcmp.eq.f32.partialorder %v508, 8.507059e+37
  %v510 = vand.u32 %v498, 2147483648
  %v511 = vor.u32 1.1754944e-38, %v510
  %v512 = vsel %vm509, %v511, %v507
  %v513 = vmul.f32 1.0, %v512
  %v514 = vadd.f32 %v472, %v67
  %v515 = vmul.f32 %v493, %v514
  %v516 = vadd.f32 %v413, %v515
  %v517 = vtanh.pop %v516
  %v518 = vsub.f32 1.0, %v513
  %v519 = vmul.f32 %v518, %v517
  %v520 = vmul.f32 %v513, %v407
  %v521 = vadd.f32 %v519, %v520
  %s522 = scalar_lea.vmem %s4, 24
  %523 = vst [vmem:[%s522] sm:$0xff] %v521
  %s524 = scalar_lea.vmem %s0, 96
  %v525 = vld [vmem:[%s524] sm:$0xff]
  %v526 = vld [vmem:[%s524 + $0x8] sm:$0xff]
  %v527 = vld [vmem:[%s524 + $0x10] sm:$0xff]
  %528 = vmatpush.msra.mxu0 %v62
  %529 = vmatpush.msra.mxu0 %v59
  %530 = vmatpush.msra.mxu0 %v56
  %531 = vmatpush.msra.mxu0 %v53
  %532 = vmatpush.msra.mxu0 %v50
  %533 = vmatpush.msra.mxu0 %v47
  %534 = vmatpush.msra.mxu0 %v44
  %535 = vmatpush.msra.mxu0 %v41
  %536 = vmatpush.msra.mxu0 %v38
  %537 = vmatpush.msra.mxu0 %v35
  %538 = vmatpush.msra.mxu0 %v32
  %539 = vmatpush.msra.mxu0 %v29
  %540 = vmatpush.msra.mxu0 %v26
  %541 = vmatpush.msra.mxu0 %v23
  %542 = vmatpush.msra.mxu0 %v20
  %543 = vmatpush.msra.mxu0 %v17
  %544 = vmatmul.f32.gmra.mxu0 %v521
  %v545 = vpop.f32.mrf.mxu0
  %v546 = vadd.f32 0.0, %v545
  %547 = vdwg.mxu0
  %548 = vmatpush.msra.mxu0 %v63
  %549 = vmatpush.msra.mxu0 %v60
  %550 = vmatpush.msra.mxu0 %v57
  %551 = vmatpush.msra.mxu0 %v54
  %552 = vmatpush.msra.mxu0 %v51
  %553 = vmatpush.msra.mxu0 %v48
  %554 = vmatpush.msra.mxu0 %v45
  %555 = vmatpush.msra.mxu0 %v42
  %556 = vmatpush.msra.mxu0 %v39
  %557 = vmatpush.msra.mxu0 %v36
  %558 = vmatpush.msra.mxu0 %v33
  %559 = vmatpush.msra.mxu0 %v30
  %560 = vmatpush.msra.mxu0 %v27
  %561 = vmatpush.msra.mxu0 %v24
  %562 = vmatpush.msra.mxu0 %v21
  %563 = vmatpush.msra.mxu0 %v18
  %564 = vmatmul.f32.gmra.mxu0 %v521
  %v565 = vpop.f32.mrf.mxu0
  %v566 = vadd.f32 0.0, %v565
  %567 = vdwg.mxu0
  %568 = vmatpush.msra.mxu0 %v64
  %569 = vmatpush.msra.mxu0 %v61
  %570 = vmatpush.msra.mxu0 %v58
  %571 = vmatpush.msra.mxu0 %v55
  %572 = vmatpush.msra.mxu0 %v52
  %573 = vmatpush.msra.mxu0 %v49
  %574 = vmatpush.msra.mxu0 %v46
  %575 = vmatpush.msra.mxu0 %v43
  %576 = vmatpush.msra.mxu0 %v40
  %577 = vmatpush.msra.mxu0 %v37
  %578 = vmatpush.msra.mxu0 %v34
  %579 = vmatpush.msra.mxu0 %v31
  %580 = vmatpush.msra.mxu0 %v28
  %581 = vmatpush.msra.mxu0 %v25
  %582 = vmatpush.msra.mxu0 %v22
  %583 = vmatpush.msra.mxu0 %v19
  %584 = vmatmul.f32.gmra.mxu0 %v521
  %v585 = vpop.f32.mrf.mxu0
  %v586 = vadd.f32 0.0, %v585
  %587 = vdwg.mxu0
  %v588 = vadd.f32 %v525, %v546
  %v589 = vxor.u32 %v588, 2147483648
  %v590 = vmul.f32 %v589, 1.442695
  %v591 = vpow.pop %v590
  %v592 = vadd.f32 %v591, 1.0
  %v593 = vrcp.pop %v592
  %v594 = vmul.f32 %v592, %v593
  %v595 = vsub.f32 1.0, %v594
  %v596 = vmul.f32 %v593, %v595
  %v597 = vadd.f32 %v593, %v596
  %vm598 = vweird.f32 %v592
  %vm599 = vweird.f32 %v593
  %vm600 = vmor %vm598, %vm599
  %v601 = vsel %vm600, %v593, %v597
  %v602 = vand.u32 2147483647, %v592
  %vm603 = vcmp.eq.f32.partialorder %v602, 8.507059e+37
  %v604 = vand.u32 %v592, 2147483648
  %v605 = vor.u32 1.1754944e-38, %v604
  %v606 = vsel %vm603, %v605, %v601
  %v607 = vmul.f32 1.0, %v606
  %v608 = vadd.f32 %v526, %v566
  %v609 = vxor.u32 %v608, 2147483648
  %v610 = vmul.f32 %v609, 1.442695
  %v611 = vpow.pop %v610
  %v612 = vadd.f32 %v611, 1.0
  %v613 = vrcp.pop %v612
  %v614 = vmul.f32 %v612, %v613
  %v615 = vsub.f32 1.0, %v614
  %v616 = vmul.f32 %v613, %v615
  %v617 = vadd.f32 %v613, %v616
  %vm618 = vweird.f32 %v612
  %vm619 = vweird.f32 %v613
  %vm620 = vmor %vm618, %vm619
  %v621 = vsel %vm620, %v613, %v617
  %v622 = vand.u32 2147483647, %v612
  %vm623 = vcmp.eq.f32.partialorder %v622, 8.507059e+37
  %v624 = vand.u32 %v612, 2147483648
  %v625 = vor.u32 1.1754944e-38, %v624
  %v626 = vsel %vm623, %v625, %v621
  %v627 = vmul.f32 1.0, %v626
  %v628 = vadd.f32 %v586, %v67
  %v629 = vmul.f32 %v607, %v628
  %v630 = vadd.f32 %v527, %v629
  %v631 = vtanh.pop %v630
  %v632 = vsub.f32 1.0, %v627
  %v633 = vmul.f32 %v632, %v631
  %v634 = vmul.f32 %v627, %v521
  %v635 = vadd.f32 %v633, %v634
  %s636 = scalar_lea.vmem %s4, 32
  %637 = vst [vmem:[%s636] sm:$0xff] %v635
  %s638 = scalar_lea.vmem %s0, 120
  %v639 = vld [vmem:[%s638] sm:$0xff]
  %v640 = vld [vmem:[%s638 + $0x8] sm:$0xff]
  %v641 = vld [vmem:[%s638 + $0x10] sm:$0xff]
  %642 = vmatpush.msra.mxu0 %v62
  %643 = vmatpush.msra.mxu0 %v59
  %644 = vmatpush.msra.mxu0 %v56
  %645 = vmatpush.msra.mxu0 %v53
  %646 = vmatpush.msra.mxu0 %v50
  %647 = vmatpush.msra.mxu0 %v47
  %648 = vmatpush.msra.mxu0 %v44
  %649 = vmatpush.msra.mxu0 %v41
  %650 = vmatpush.msra.mxu0 %v38
  %651 = vmatpush.msra.mxu0 %v35
  %652 = vmatpush.msra.mxu0 %v32
  %653 = vmatpush.msra.mxu0 %v29
  %654 = vmatpush.msra.mxu0 %v26
  %655 = vmatpush.msra.mxu0 %v23
  %656 = vmatpush.msra.mxu0 %v20
  %657 = vmatpush.msra.mxu0 %v17
  %658 = vmatmul.f32.gmra.mxu0 %v635
  %v659 = vpop.f32.mrf.mxu0
  %v660 = vadd.f32 0.0, %v659
  %661 = vdwg.mxu0
  %662 = vmatpush.msra.mxu0 %v63
  %663 = vmatpush.msra.mxu0 %v60
  %664 = vmatpush.msra.mxu0 %v57
  %665 = vmatpush.msra.mxu0 %v54
  %666 = vmatpush.msra.mxu0 %v51
  %667 = vmatpush.msra.mxu0 %v48
  %668 = vmatpush.msra.mxu0 %v45
  %669 = vmatpush.msra.mxu0 %v42
  %670 = vmatpush.msra.mxu0 %v39
  %671 = vmatpush.msra.mxu0 %v36
  %672 = vmatpush.msra.mxu0 %v33
  %673 = vmatpush.msra.mxu0 %v30
  %674 = vmatpush.msra.mxu0 %v27
  %675 = vmatpush.msra.mxu0 %v24
  %676 = vmatpush.msra.mxu0 %v21
  %677 = vmatpush.msra.mxu0 %v18
  %678 = vmatmul.f32.gmra.mxu0 %v635
  %v679 = vpop.f32.mrf.mxu0
  %v680 = vadd.f32 0.0, %v679
  %681 = vdwg.mxu0
  %682 = vmatpush.msra.mxu0 %v64
  %683 = vmatpush.msra.mxu0 %v61
  %684 = vmatpush.msra.mxu0 %v58
  %685 = vmatpush.msra.mxu0 %v55
  %686 = vmatpush.msra.mxu0 %v52
  %687 = vmatpush.msra.mxu0 %v49
  %688 = vmatpush.msra.mxu0 %v46
  %689 = vmatpush.msra.mxu0 %v43
  %690 = vmatpush.msra.mxu0 %v40
  %691 = vmatpush.msra.mxu0 %v37
  %692 = vmatpush.msra.mxu0 %v34
  %693 = vmatpush.msra.mxu0 %v31
  %694 = vmatpush.msra.mxu0 %v28
  %695 = vmatpush.msra.mxu0 %v25
  %696 = vmatpush.msra.mxu0 %v22
  %697 = vmatpush.msra.mxu0 %v19
  %698 = vmatmul.f32.gmra.mxu0 %v635
  %v699 = vpop.f32.mrf.mxu0
  %v700 = vadd.f32 0.0, %v699
  %701 = vdwg.mxu0
  %v702 = vadd.f32 %v639, %v660
  %v703 = vxor.u32 %v702, 2147483648
  %v704 = vmul.f32 %v703, 1.442695
  %v705 = vpow.pop %v704
  %v706 = vadd.f32 %v705, 1.0
  %v707 = vrcp.pop %v706
  %v708 = vmul.f32 %v706, %v707
  %v709 = vsub.f32 1.0, %v708
  %v710 = vmul.f32 %v707, %v709
  %v711 = vadd.f32 %v707, %v710
  %vm712 = vweird.f32 %v706
  %vm713 = vweird.f32 %v707
  %vm714 = vmor %vm712, %vm713
  %v715 = vsel %vm714, %v707, %v711
  %v716 = vand.u32 2147483647, %v706
  %vm717 = vcmp.eq.f32.partialorder %v716, 8.507059e+37
  %v718 = vand.u32 %v706, 2147483648
  %v719 = vor.u32 1.1754944e-38, %v718
  %v720 = vsel %vm717, %v719, %v715
  %v721 = vmul.f32 1.0, %v720
  %v722 = vadd.f32 %v640, %v680
  %v723 = vxor.u32 %v722, 2147483648
  %v724 = vmul.f32 %v723, 1.442695
  %v725 = vpow.pop %v724
  %v726 = vadd.f32 %v725, 1.0
  %v727 = vrcp.pop %v726
  %v728 = vmul.f32 %v726, %v727
  %v729 = vsub.f32 1.0, %v728
  %v730 = vmul.f32 %v727, %v729
  %v731 = vadd.f32 %v727, %v730
  %vm732 = vweird.f32 %v726
  %vm733 = vweird.f32 %v727
  %vm734 = vmor %vm732, %vm733
  %v735 = vsel %vm734, %v727, %v731
  %v736 = vand.u32 2147483647, %v726
  %vm737 = vcmp.eq.f32.partialorder %v736, 8.507059e+37
  %v738 = vand.u32 %v726, 2147483648
  %v739 = vor.u32 1.1754944e-38, %v738
  %v740 = vsel %vm737, %v739, %v735
  %v741 = vmul.f32 1.0, %v740
  %v742 = vadd.f32 %v700, %v67
  %v743 = vmul.f32 %v721, %v742
  %v744 = vadd.f32 %v641, %v743
  %v745 = vtanh.pop %v744
  %v746 = vsub.f32 1.0, %v741
  %v747 = vmul.f32 %v746, %v745
  %v748 = vmul.f32 %v741, %v635
  %v749 = vadd.f32 %v747, %v748
  %s750 = scalar_lea.vmem %s4, 40
  %751 = vst [vmem:[%s750] sm:$0xff] %v749
  %s752 = scalar_lea.vmem %s0, 144
  %v753 = vld [vmem:[%s752] sm:$0xff]
  %v754 = vld [vmem:[%s752 + $0x8] sm:$0xff]
  %v755 = vld [vmem:[%s752 + $0x10] sm:$0xff]
  %756 = vmatpush.msra.mxu0 %v62
  %757 = vmatpush.msra.mxu0 %v59
  %758 = vmatpush.msra.mxu0 %v56
  %759 = vmatpush.msra.mxu0 %v53
  %760 = vmatpush.msra.mxu0 %v50
  %761 = vmatpush.msra.mxu0 %v47
  %762 = vmatpush.msra.mxu0 %v44
  %763 = vmatpush.msra.mxu0 %v41
  %764 = vmatpush.msra.mxu0 %v38
  %765 = vmatpush.msra.mxu0 %v35
  %766 = vmatpush.msra.mxu0 %v32
  %767 = vmatpush.msra.mxu0 %v29
  %768 = vmatpush.msra.mxu0 %v26
  %769 = vmatpush.msra.mxu0 %v23
  %770 = vmatpush.msra.mxu0 %v20
  %771 = vmatpush.msra.mxu0 %v17
  %772 = vmatmul.f32.gmra.mxu0 %v749
  %v773 = vpop.f32.mrf.mxu0
  %v774 = vadd.f32 0.0, %v773
  %775 = vdwg.mxu0
  %776 = vmatpush.msra.mxu0 %v63
  %777 = vmatpush.msra.mxu0 %v60
  %778 = vmatpush.msra.mxu0 %v57
  %779 = vmatpush.msra.mxu0 %v54
  %780 = vmatpush.msra.mxu0 %v51
  %781 = vmatpush.msra.mxu0 %v48
  %782 = vmatpush.msra.mxu0 %v45
  %783 = vmatpush.msra.mxu0 %v42
  %784 = vmatpush.msra.mxu0 %v39
  %785 = vmatpush.msra.mxu0 %v36
  %786 = vmatpush.msra.mxu0 %v33
  %787 = vmatpush.msra.mxu0 %v30
  %788 = vmatpush.msra.mxu0 %v27
  %789 = vmatpush.msra.mxu0 %v24
  %790 = vmatpush.msra.mxu0 %v21
  %791 = vmatpush.msra.mxu0 %v18
  %792 = vmatmul.f32.gmra.mxu0 %v749
  %v793 = vpop.f32.mrf.mxu0
  %v794 = vadd.f32 0.0, %v793
  %795 = vdwg.mxu0
  %796 = vmatpush.msra.mxu0 %v64
  %797 = vmatpush.msra.mxu0 %v61
  %798 = vmatpush.msra.mxu0 %v58
  %799 = vmatpush.msra.mxu0 %v55
  %800 = vmatpush.msra.mxu0 %v52
  %801 = vmatpush.msra.mxu0 %v49
  %802 = vmatpush.msra.mxu0 %v46
  %803 = vmatpush.msra.mxu0 %v43
  %804 = vmatpush.msra.mxu0 %v40
  %805 = vmatpush.msra.mxu0 %v37
  %806 = vmatpush.msra.mxu0 %v34
  %807 = vmatpush.msra.mxu0 %v31
  %808 = vmatpush.msra.mxu0 %v28
  %809 = vmatpush.msra.mxu0 %v25
  %810 = vmatpush.msra.mxu0 %v22
  %811 = vmatpush.msra.mxu0 %v19
  %812 = vmatmul.f32.gmra.mxu0 %v749
  %v813 = vpop.f32.mrf.mxu0
  %v814 = vadd.f32 0.0, %v813
  %815 = vdwg.mxu0
  %v816 = vadd.f32 %v753, %v774
  %v817 = vxor.u32 %v816, 2147483648
  %v818 = vmul.f32 %v817, 1.442695
  %v819 = vpow.pop %v818
  %v820 = vadd.f32 %v819, 1.0
  %v821 = vrcp.pop %v820
  %v822 = vmul.f32 %v820, %v821
  %v823 = vsub.f32 1.0, %v822
  %v824 = vmul.f32 %v821, %v823
  %v825 = vadd.f32 %v821, %v824
  %vm826 = vweird.f32 %v820
  %vm827 = vweird.f32 %v821
  %vm828 = vmor %vm826, %vm827
  %v829 = vsel %vm828, %v821, %v825
  %v830 = vand.u32 2147483647, %v820
  %vm831 = vcmp.eq.f32.partialorder %v830, 8.507059e+37
  %v832 = vand.u32 %v820, 2147483648
  %v833 = vor.u32 1.1754944e-38, %v832
  %v834 = vsel %vm831, %v833, %v829
  %v835 = vmul.f32 1.0, %v834
  %v836 = vadd.f32 %v754, %v794
  %v837 = vxor.u32 %v836, 2147483648
  %v838 = vmul.f32 %v837, 1.442695
  %v839 = vpow.pop %v838
  %v840 = vadd.f32 %v839, 1.0
  %v841 = vrcp.pop %v840
  %v842 = vmul.f32 %v840, %v841
  %v843 = vsub.f32 1.0, %v842
  %v844 = vmul.f32 %v841, %v843
  %v845 = vadd.f32 %v841, %v844
  %vm846 = vweird.f32 %v840
  %vm847 = vweird.f32 %v841
  %vm848 = vmor %vm846, %vm847
  %v849 = vsel %vm848, %v841, %v845
  %v850 = vand.u32 2147483647, %v840
  %vm851 = vcmp.eq.f32.partialorder %v850, 8.507059e+37
  %v852 = vand.u32 %v840, 2147483648
  %v853 = vor.u32 1.1754944e-38, %v852
  %v854 = vsel %vm851, %v853, %v849
  %v855 = vmul.f32 1.0, %v854
  %v856 = vadd.f32 %v814, %v67
  %v857 = vmul.f32 %v835, %v856
  %v858 = vadd.f32 %v755, %v857
  %v859 = vtanh.pop %v858
  %v860 = vsub.f32 1.0, %v855
  %v861 = vmul.f32 %v860, %v859
  %v862 = vmul.f32 %v855, %v749
  %v863 = vadd.f32 %v861, %v862
  %s864 = scalar_lea.vmem %s4, 48
  %865 = vst [vmem:[%s864] sm:$0xff] %v863
  %s866 = scalar_lea.vmem %s0, 168
  %v867 = vld [vmem:[%s866] sm:$0xff]
  %v868 = vld [vmem:[%s866 + $0x8] sm:$0xff]
  %v869 = vld [vmem:[%s866 + $0x10] sm:$0xff]
  %870 = vmatpush.msra.mxu0 %v62
  %871 = vmatpush.msra.mxu0 %v59
  %872 = vmatpush.msra.mxu0 %v56
  %873 = vmatpush.msra.mxu0 %v53
  %874 = vmatpush.msra.mxu0 %v50
  %875 = vmatpush.msra.mxu0 %v47
  %876 = vmatpush.msra.mxu0 %v44
  %877 = vmatpush.msra.mxu0 %v41
  %878 = vmatpush.msra.mxu0 %v38
  %879 = vmatpush.msra.mxu0 %v35
  %880 = vmatpush.msra.mxu0 %v32
  %881 = vmatpush.msra.mxu0 %v29
  %882 = vmatpush.msra.mxu0 %v26
  %883 = vmatpush.msra.mxu0 %v23
  %884 = vmatpush.msra.mxu0 %v20
  %885 = vmatpush.msra.mxu0 %v17
  %886 = vmatmul.f32.gmra.mxu0 %v863
  %v887 = vpop.f32.mrf.mxu0
  %v888 = vadd.f32 0.0, %v887
  %889 = vdwg.mxu0
  %890 = vmatpush.msra.mxu0 %v63
  %891 = vmatpush.msra.mxu0 %v60
  %892 = vmatpush.msra.mxu0 %v57
  %893 = vmatpush.msra.mxu0 %v54
  %894 = vmatpush.msra.mxu0 %v51
  %895 = vmatpush.msra.mxu0 %v48
  %896 = vmatpush.msra.mxu0 %v45
  %897 = vmatpush.msra.mxu0 %v42
  %898 = vmatpush.msra.mxu0 %v39
  %899 = vmatpush.msra.mxu0 %v36
  %900 = vmatpush.msra.mxu0 %v33
  %901 = vmatpush.msra.mxu0 %v30
  %902 = vmatpush.msra.mxu0 %v27
  %903 = vmatpush.msra.mxu0 %v24
  %904 = vmatpush.msra.mxu0 %v21
  %905 = vmatpush.msra.mxu0 %v18
  %906 = vmatmul.f32.gmra.mxu0 %v863
  %v907 = vpop.f32.mrf.mxu0
  %v908 = vadd.f32 0.0, %v907
  %909 = vdwg.mxu0
  %910 = vmatpush.msra.mxu0 %v64
  %911 = vmatpush.msra.mxu0 %v61
  %912 = vmatpush.msra.mxu0 %v58
  %913 = vmatpush.msra.mxu0 %v55
  %914 = vmatpush.msra.mxu0 %v52
  %915 = vmatpush.msra.mxu0 %v49
  %916 = vmatpush.msra.mxu0 %v46
  %917 = vmatpush.msra.mxu0 %v43
  %918 = vmatpush.msra.mxu0 %v40
  %919 = vmatpush.msra.mxu0 %v37
  %920 = vmatpush.msra.mxu0 %v34
  %921 = vmatpush.msra.mxu0 %v31
  %922 = vmatpush.msra.mxu0 %v28
  %923 = vmatpush.msra.mxu0 %v25
  %924 = vmatpush.msra.mxu0 %v22
  %925 = vmatpush.msra.mxu0 %v19
  %926 = vmatmul.f32.gmra.mxu0 %v863
  %v927 = vpop.f32.mrf.mxu0
  %v928 = vadd.f32 0.0, %v927
  %929 = vdwg.mxu0
  %v930 = vadd.f32 %v867, %v888
  %v931 = vxor.u32 %v930, 2147483648
  %v932 = vmul.f32 %v931, 1.442695
  %v933 = vpow.pop %v932
  %v934 = vadd.f32 %v933, 1.0
  %v935 = vrcp.pop %v934
  %v936 = vmul.f32 %v934, %v935
  %v937 = vsub.f32 1.0, %v936
  %v938 = vmul.f32 %v935, %v937
  %v939 = vadd.f32 %v935, %v938
  %vm940 = vweird.f32 %v934
  %vm941 = vweird.f32 %v935
  %vm942 = vmor %vm940, %vm941
  %v943 = vsel %vm942, %v935, %v939
  %v944 = vand.u32 2147483647, %v934
  %vm945 = vcmp.eq.f32.partialorder %v944, 8.507059e+37
  %v946 = vand.u32 %v934, 2147483648
  %v947 = vor.u32 1.1754944e-38, %v946
  %v948 = vsel %vm945, %v947, %v943
  %v949 = vmul.f32 1.0, %v948
  %v950 = vadd.f32 %v868, %v908
  %v951 = vxor.u32 %v950, 2147483648
  %v952 = vmul.f32 %v951, 1.442695
  %v953 = vpow.pop %v952
  %v954 = vadd.f32 %v953, 1.0
  %v955 = vrcp.pop %v954
  %v956 = vmul.f32 %v954, %v955
  %v957 = vsub.f32 1.0, %v956
  %v958 = vmul.f32 %v955, %v957
  %v959 = vadd.f32 %v955, %v958
  %vm960 = vweird.f32 %v954
  %vm961 = vweird.f32 %v955
  %vm962 = vmor %vm960, %vm961
  %v963 = vsel %vm962, %v955, %v959
  %v964 = vand.u32 2147483647, %v954
  %vm965 = vcmp.eq.f32.partialorder %v964, 8.507059e+37
  %v966 = vand.u32 %v954, 2147483648
  %v967 = vor.u32 1.1754944e-38, %v966
  %v968 = vsel %vm965, %v967, %v963
  %v969 = vmul.f32 1.0, %v968
  %v970 = vadd.f32 %v928, %v67
  %v971 = vmul.f32 %v949, %v970
  %v972 = vadd.f32 %v869, %v971
  %v973 = vtanh.pop %v972
  %v974 = vsub.f32 1.0, %v969
  %v975 = vmul.f32 %v974, %v973
  %v976 = vmul.f32 %v969, %v863
  %v977 = vadd.f32 %v975, %v976
  %s978 = scalar_lea.vmem %s4, 56
  %979 = vst [vmem:[%s978] sm:$0xff] %v977
  // Predicated region
  $region18: #{_encoder_core.1} parent=0 // pred_check
    _
  $region19: #{_encoder_core.1} parent=0 // pred_check_branch
    %981 = sbr.rel (0) target = $region21
  $region20: #{_encoder_core.1} parent=0 // pred_region
    _
  $region21: #{_encoder_core.1} parent=0 // pred_fallthru
    _
  // Predicated region
  $region22: #{_encoder_core.1} parent=0 // pred_check
    _
  $region23: #{_encoder_core.1} parent=0 // pred_check_branch
    %983 = sbr.rel (0) target = $region25
  $region24: #{_encoder_core.1} parent=0 // pred_region
    _
  $region25: #{_encoder_core.1} parent=0 // pred_fallthru
    _

</llo_original>
